<compile_context>
chip_gen: v6e
topology: v6e:2x2x1
jax: 0.10.0
libtpu: 0.0.40
codegen_flags: <defaults>
</compile_context>

<pallas_src>
import functools

import jax
import jax.numpy as jnp
from jax import lax
from jax.experimental import pallas as pl
from jax.experimental.pallas import tpu as pltpu


# ---------------------------------------------------------------------------
# Fused kernel: kNN + NeighConv(mlp + max-agg) + tconv1 + relu + strided pool.
# ---------------------------------------------------------------------------
def _xgn_kernel(x_ref, wc_ref, bc_ref, w1_ref, w2_ref, bm_ref, o_ref, scr_ref,
                *, num_neigh, stride):
    # x_ref:(Bb,T,C) f32   wc_ref:(3C,C) bf16   bc_ref:(1,C) f32
    # w1_ref/w2_ref:(C,C) bf16   bm_ref:(1,C) f32
    # o_ref:(Bb,T_out,C) f32     scr_ref:(Bb*T,C) f32 VMEM scratch
    Bb, T, C = x_ref.shape
    t_out = o_ref.shape[1]
    BT = Bb * T

    x3 = x_ref[...]                                     # (Bb, T, C) f32
    xf = x3.reshape(BT, C)                              # batch folded into M (free)
    xbf = xf.astype(jnp.bfloat16)

    # --- kNN scores: single fused batched matmul, f32 HIGHEST for exact ranking ---
    # score[b,i,j] = ||x_j||^2 - 2 x_i.x_j  (||x_i||^2 dropped: constant per row)
    xsq = jnp.sum(x3 * x3, axis=-1, keepdims=True)      # (Bb, T, 1)   lane reduce
    ones = jnp.ones((Bb, T, 1), jnp.float32)
    lhs_aug = jnp.concatenate([x3, ones], axis=-1)      # (Bb, T, C+1)
    rhs_aug = jnp.concatenate([-2.0 * x3, xsq], axis=-1)
    score = lax.dot_general(lhs_aug, rhs_aug,
                            (((2,), (2,)), ((0,), (0,))),
                            preferred_element_type=jnp.float32,
                            precision=lax.Precision.HIGHEST)   # (Bb, T, T)

    # --- neighbour / centre transforms, batch-folded and hoisted out of the K loop ---
    z = jnp.dot(xbf, w1_ref[...], preferred_element_type=jnp.float32)       # (BT, C)
    ctr = jnp.dot(xbf, w2_ref[...], preferred_element_type=jnp.float32) + bm_ref[...]
    z3 = z.reshape(Bb, T, C)

    # --- K iterative arg-mins -> stacked one-hots -> ONE batched gather matmul ---
    colf = lax.broadcasted_iota(jnp.int32, (T, T), 1).astype(jnp.float32)
    s = score
    oh_list = []
    for _ in range(num_neigh):                          # K is small & static
        m = jnp.min(s, axis=-1, keepdims=True)          # (Bb, T, 1) row min
        first = jnp.min(jnp.where(s <= m, colf, float(T)),
                        axis=-1, keepdims=True)         # first (lowest-index) argmin
        oh = (colf == first).astype(jnp.float32)        # (Bb, T, T) one-hot
        oh_list.append(oh)
        s = jnp.where(oh > 0.0, jnp.inf, s)             # mask the selected neighbour
    OH = jnp.concatenate(oh_list, axis=1)               # (Bb, K*T, T)
    gat = lax.dot_general(OH, z3, (((2,), (1,)), ((0,), (0,))),
                          preferred_element_type=jnp.float32)   # (Bb, K*T, C)
    g = gat[:, 0:T]                                      # max over K: pure VPU
    for k in range(1, num_neigh):
        g = jnp.maximum(g, gat[:, k * T:(k + 1) * T])
    g_out = g.reshape(BT, C) + ctr                       # (BT, C)

    # --- tconv1: Conv1d(C, C, kernel=3, padding=1) on the batch-folded slab ---
    # per-batch boundary mask doubles as zero padding AND cross-batch roll guard.
    tf = lax.broadcasted_iota(jnp.int32, (Bb, T, C), 1).reshape(BT, C)
    first_row = tf == 0
    last_row = tf == T - 1
    x_prev = jnp.where(first_row, 0.0, pltpu.roll(xf, shift=1, axis=0))       # x[t-1]
    x_next = jnp.where(last_row, 0.0, pltpu.roll(xf, shift=BT - 1, axis=0))   # x[t+1]
    if C < 128:
        # small C: pack taps for a deeper contraction: (BT,3C)@(3C,C)
        lhs = jnp.concatenate([x_prev, xf, x_next], axis=-1).astype(jnp.bfloat16)
        c_out = jnp.dot(lhs, wc_ref[...], preferred_element_type=jnp.float32)
    else:
        # large C: skip the 3x concat copy, three accumulating matmuls instead
        c_out = (jnp.dot(x_prev.astype(jnp.bfloat16), wc_ref[0:C, :],
                         preferred_element_type=jnp.float32)
                 + jnp.dot(xbf, wc_ref[C:2 * C, :],
                           preferred_element_type=jnp.float32)
                 + jnp.dot(x_next.astype(jnp.bfloat16), wc_ref[2 * C:3 * C, :],
                           preferred_element_type=jnp.float32))
    c_out = c_out + bc_ref[...]

    # --- relu + window-3 max; MaxPool1d pads with -inf, but y >= 0 so 0 padding ok ---
    y = jnp.maximum(c_out + g_out, 0.0)
    y_prev = jnp.where(first_row, 0.0, pltpu.roll(y, shift=1, axis=0))
    y_next = jnp.where(last_row, 0.0, pltpu.roll(y, shift=BT - 1, axis=0))
    scr_ref[...] = jnp.maximum(jnp.maximum(y_prev, y), y_next)    # (BT, C)

    # --- strided row subsample via strided sublane reads (no selection matmul) ---
    for b in range(Bb):
        o_ref[b] = scr_ref[pl.ds(b * T, t_out, stride=stride), :]


# ---------------------------------------------------------------------------
# Wrapper (layout glue only: NCW<->NWC transposes and weight repacking)
# ---------------------------------------------------------------------------
def _pick_batch_block(B, max_bb=8):
    """Largest divisor of B (<= max_bb) that still leaves >= 2 grid steps (v7x)."""
    best = 1
    for bb in range(1, min(B, max_bb) + 1):
        if B % bb == 0 and (B // bb >= 2 or B == 1):
            best = bb
    return best


def xgn_forward(x_bct, wconv, bconv, wmlp, bmlp, *, num_neigh, stride):
    assert num_neigh >= 1, "num_neigh must be >= 1"
    B, C, T = x_bct.shape
    T_out = (T - 1) // stride + 1
    Bb = _pick_batch_block(B)

    x_tc = jnp.transpose(x_bct, (0, 2, 1)).astype(jnp.float32)          # (B, T, C)

    # Conv1d weight (Cout, Cin, 3) -> packed (3*Cin, Cout) bf16, rows = [t-1 | t | t+1]
    wc3 = jnp.concatenate(
        [wconv[:, :, 0].T, wconv[:, :, 1].T, wconv[:, :, 2].T], axis=0
    ).astype(jnp.bfloat16)                                               # (3C, C)
    bc = bconv.reshape(1, C).astype(jnp.float32)
    w1 = wmlp[:, :C].T.astype(jnp.bfloat16)                              # neighbour half
    w2 = wmlp[:, C:].T.astype(jnp.bfloat16)                              # centre half
    bm = bmlp.reshape(1, C).astype(jnp.float32)

    kernel = functools.partial(_xgn_kernel, num_neigh=num_neigh, stride=stride)
    out_tc = pl.pallas_call(
        kernel,
        out_shape=jax.ShapeDtypeStruct((B, T_out, C), jnp.float32),
        grid=(B // Bb,),
        in_specs=[
            pl.BlockSpec((Bb, T, C), lambda g: (g, 0, 0)),
            pl.BlockSpec((3 * C, C), lambda g: (0, 0)),
            pl.BlockSpec((1, C), lambda g: (0, 0)),
            pl.BlockSpec((C, C), lambda g: (0, 0)),
            pl.BlockSpec((C, C), lambda g: (0, 0)),
            pl.BlockSpec((1, C), lambda g: (0, 0)),
        ],
        out_specs=pl.BlockSpec((Bb, T_out, C), lambda g: (g, 0, 0)),
        scratch_shapes=[pltpu.VMEM((Bb * T, C), jnp.float32)],
        compiler_params=pltpu.CompilerParams(
            dimension_semantics=("parallel",)),                          # 2 TCs on v7x
    )(x_tc, wc3, bc, w1, w2, bm)

    return jnp.transpose(out_tc, (0, 2, 1))                              # (B, C, T_out)


# ---------------------------------------------------------------------------
# Pure-JAX reference (mirrors the PyTorch forward) for a sanity check.
# ---------------------------------------------------------------------------
def xgn_reference(x, wconv, bconv, wmlp, bmlp, *, num_neigh, stride):
    B, C, T = x.shape
    hi = lax.Precision.HIGHEST
    xt = jnp.transpose(x, (0, 2, 1))                                     # (B, T, C)
    xpad = jnp.pad(xt, ((0, 0), (1, 1), (0, 0)))
    c_out = (jnp.einsum("btc,oc->bto", xpad[:, :-2], wconv[:, :, 0], precision=hi)
             + jnp.einsum("btc,oc->bto", xpad[:, 1:-1], wconv[:, :, 1], precision=hi)
             + jnp.einsum("btc,oc->bto", xpad[:, 2:], wconv[:, :, 2], precision=hi)
             + bconv)
    dif = jnp.sum((xt[:, None, :, :] - xt[:, :, None, :]) ** 2, axis=-1)
    idx = lax.top_k(-dif, num_neigh)[1]
    neigh = xt[jnp.arange(B)[:, None, None], idx, :]                     # (B, T, K, C)
    ctr = jnp.broadcast_to(xt[:, :, None, :], neigh.shape)
    feat = jnp.concatenate([neigh, ctr], axis=-1)
    g = jnp.einsum("btkf,of->btko", feat, wmlp, precision=hi) + bmlp
    g_out = jnp.max(g, axis=2)
    y = jnp.maximum(c_out + g_out, 0.0)
    ypad = jnp.pad(y, ((0, 0), (1, 1), (0, 0)), constant_values=-jnp.inf)
    T_out = (T - 1) // stride + 1
    out = jnp.stack([jnp.max(ypad[:, t * stride:t * stride + 3], axis=1)
                     for t in range(T_out)], axis=1)
    return jnp.transpose(out, (0, 2, 1))


if __name__ == "__main__":
    NUM_NEIGH, STRIDE = 5, 2
    key = jax.random.PRNGKey(0)
    for B in (2, 4):                       # B=2 -> Bb=1 (grid 2); B=4 -> Bb=2 (grid 2)
        C, T = 32, 16
        k1, k2, k3, k4, k5, key = jax.random.split(key, 6)
        x = jax.random.normal(k5, (B, C, T), jnp.float32)
        wconv = 0.1 * jax.random.normal(k1, (C, C, 3), jnp.float32)      # Conv1d weight
        bconv = 0.1 * jax.random.normal(k2, (C,), jnp.float32)           # Conv1d bias
        wmlp = 0.1 * jax.random.normal(k3, (C, 2 * C), jnp.float32)      # Linear weight
        bmlp = 0.1 * jax.random.normal(k4, (C,), jnp.float32)            # Linear bias

        out = xgn_forward(x, wconv, bconv, wmlp, bmlp,
                          num_neigh=NUM_NEIGH, stride=STRIDE)
        out = jax.block_until_ready(out)

        ref = xgn_reference(x, wconv, bconv, wmlp, bmlp,
                            num_neigh=NUM_NEIGH, stride=STRIDE)
        err = float(jnp.max(jnp.abs(out - ref)))
        assert out.shape == (B, C, (T - 1) // STRIDE + 1), out.shape
        # bf16 feature matmuls (f32 accumulation) vs f32 HIGHEST-precision reference.
        assert err < 3e-2, f"B={B}: max abs error {err}"
    print("KERNEL_OK")
</pallas_src>

<mosaic_0001>
module attributes {stable_mosaic.version = 11 : i64} {
  func.func @_xgn_kernel(%arg0: i32, %arg1: memref<1x16x32xf32, #tpu.memory_space<vmem>>, %arg2: memref<96x32xbf16, #tpu.memory_space<vmem>>, %arg3: memref<1x32xf32, #tpu.memory_space<vmem>>, %arg4: memref<32x32xbf16, #tpu.memory_space<vmem>>, %arg5: memref<32x32xbf16, #tpu.memory_space<vmem>>, %arg6: memref<1x32xf32, #tpu.memory_space<vmem>>, %arg7: memref<1x8x32xf32, #tpu.memory_space<vmem>>, %arg8: memref<16x32xf32, #tpu.memory_space<vmem>>) attributes {dimension_semantics = [#tpu.dimension_semantics<parallel>], iteration_bounds = array<i64: 2>, scalar_prefetch = 0 : i64, scratch_operands = 1 : i64, tpu.core_type = #tpu.core_type<tc>, window_params = [{transform_indices = @transform_0, window_bounds = array<i64: 1, 16, 32>}, {pipeline_mode = #tpu.pipeline_mode<synchronous>, transform_indices = @transform_1, window_bounds = array<i64: 96, 32>}, {pipeline_mode = #tpu.pipeline_mode<synchronous>, transform_indices = @transform_2, window_bounds = array<i64: 1, 32>}, {pipeline_mode = #tpu.pipeline_mode<synchronous>, transform_indices = @transform_3, window_bounds = array<i64: 32, 32>}, {pipeline_mode = #tpu.pipeline_mode<synchronous>, transform_indices = @transform_4, window_bounds = array<i64: 32, 32>}, {pipeline_mode = #tpu.pipeline_mode<synchronous>, transform_indices = @transform_5, window_bounds = array<i64: 1, 32>}, {transform_indices = @transform_6, window_bounds = array<i64: 1, 8, 32>}]} {
    %c0 = arith.constant 0 : index
    %c0_0 = arith.constant 0 : index
    %c0_1 = arith.constant 0 : index
    %0 = vector.load %arg1[%c0, %c0_0, %c0_1] : memref<1x16x32xf32, #tpu.memory_space<vmem>>, vector<1x16x32xf32>
    %1 = vector.shape_cast %0 : vector<1x16x32xf32> to vector<16x32xf32>
    %2 = arith.truncf %1 : vector<16x32xf32> to vector<16x32xbf16>
    %3 = arith.mulf %0, %0 : vector<1x16x32xf32>
    %cst = arith.constant dense<0.000000e+00> : vector<1x16xf32>
    %4 = vector.multi_reduction <add>, %3, %cst [2] : vector<1x16x32xf32> to vector<1x16xf32>
    %5 = vector.shape_cast %4 : vector<1x16xf32> to vector<1x16x1xf32>
    %cst_2 = arith.constant 1.000000e+00 : f32
    %6 = vector.broadcast %cst_2 : f32 to vector<1x16x1xf32>
    %7 = tpu.concatenate %0, %6 in 2 : vector<1x16x32xf32>, vector<1x16x1xf32> -> vector<1x16x33xf32>
    %cst_3 = arith.constant -2.000000e+00 : f32
    %8 = vector.broadcast %cst_3 : f32 to vector<1x16x32xf32>
    %9 = arith.mulf %8, %0 : vector<1x16x32xf32>
    %10 = tpu.concatenate %9, %5 in 2 : vector<1x16x32xf32>, vector<1x16x1xf32> -> vector<1x16x33xf32>
    %cst_4 = arith.constant dense<0.000000e+00> : vector<1x16x16xf32>
    %11 = tpu.matmul %7, %10, %cst_4 {dimension_numbers = #tpu.dot_dimension_numbers<[2], [2], [1], [1], [0, 0, 0, 1, 1, 1], [0], [0]>, precision = #tpu.contract_precision<fp32>} : vector<1x16x33xf32>, vector<1x16x33xf32>, vector<1x16x16xf32> -> vector<1x16x16xf32>
    %c0_5 = arith.constant 0 : index
    %c0_6 = arith.constant 0 : index
    %12 = vector.load %arg4[%c0_5, %c0_6] : memref<32x32xbf16, #tpu.memory_space<vmem>>, vector<32x32xbf16>
    %cst_7 = arith.constant dense<0.000000e+00> : vector<16x32xf32>
    %13 = tpu.matmul %2, %12, %cst_7 {dimension_numbers = #tpu.dot_dimension_numbers<[1], [0], [0], [1], [0, 0, 1, 1], [], []>} : vector<16x32xbf16>, vector<32x32xbf16>, vector<16x32xf32> -> vector<16x32xf32>
    %c0_8 = arith.constant 0 : index
    %c0_9 = arith.constant 0 : index
    %14 = vector.load %arg5[%c0_8, %c0_9] : memref<32x32xbf16, #tpu.memory_space<vmem>>, vector<32x32xbf16>
    %cst_10 = arith.constant dense<0.000000e+00> : vector<16x32xf32>
    %15 = tpu.matmul %2, %14, %cst_10 {dimension_numbers = #tpu.dot_dimension_numbers<[1], [0], [0], [1], [0, 0, 1, 1], [], []>} : vector<16x32xbf16>, vector<32x32xbf16>, vector<16x32xf32> -> vector<16x32xf32>
    %c0_11 = arith.constant 0 : index
    %c0_12 = arith.constant 0 : index
    %16 = vector.load %arg6[%c0_11, %c0_12] : memref<1x32xf32, #tpu.memory_space<vmem>>, vector<1x32xf32>
    %17 = vector.broadcast %16 : vector<1x32xf32> to vector<16x32xf32>
    %18 = arith.addf %15, %17 : vector<16x32xf32>
    %19 = vector.shape_cast %13 : vector<16x32xf32> to vector<1x16x32xf32>
    %20 = tpu.iota {dimensions = array<i32: 1>} : vector<16x16xi32>
    %21 = arith.sitofp %20 : vector<16x16xi32> to vector<16x16xf32>
    %cst_13 = arith.constant dense<0x7F800000> : vector<1x16xf32>
    %22 = vector.multi_reduction <minimumf>, %11, %cst_13 [2] : vector<1x16x16xf32> to vector<1x16xf32>
    %23 = vector.shape_cast %22 : vector<1x16xf32> to vector<1x16x1xf32>
    %24 = vector.broadcast %23 : vector<1x16x1xf32> to vector<1x16x16xf32>
    %25 = arith.cmpf ole, %11, %24 : vector<1x16x16xf32>
    %cst_14 = arith.constant 1.600000e+01 : f32
    %26 = vector.shape_cast %21 : vector<16x16xf32> to vector<1x16x16xf32>
    %27 = vector.broadcast %cst_14 : f32 to vector<1x16x16xf32>
    %28 = arith.select %25, %26, %27 : vector<1x16x16xi1>, vector<1x16x16xf32>
    %cst_15 = arith.constant dense<0x7F800000> : vector<1x16xf32>
    %29 = vector.multi_reduction <minimumf>, %28, %cst_15 [2] : vector<1x16x16xf32> to vector<1x16xf32>
    %30 = vector.shape_cast %29 : vector<1x16xf32> to vector<1x16x1xf32>
    %31 = vector.shape_cast %21 : vector<16x16xf32> to vector<1x16x16xf32>
    %32 = vector.broadcast %30 : vector<1x16x1xf32> to vector<1x16x16xf32>
    %33 = arith.cmpf oeq, %31, %32 : vector<1x16x16xf32>
    %34 = arith.extui %33 : vector<1x16x16xi1> to vector<1x16x16xi32>
    %35 = arith.sitofp %34 : vector<1x16x16xi32> to vector<1x16x16xf32>
    %cst_16 = arith.constant 0.000000e+00 : f32
    %36 = vector.broadcast %cst_16 : f32 to vector<1x16x16xf32>
    %37 = arith.cmpf ogt, %35, %36 : vector<1x16x16xf32>
    %cst_17 = arith.constant 0x7F800000 : f32
    %38 = vector.broadcast %cst_17 : f32 to vector<1x16x16xf32>
    %39 = arith.select %37, %38, %11 : vector<1x16x16xi1>, vector<1x16x16xf32>
    %cst_18 = arith.constant dense<0x7F800000> : vector<1x16xf32>
    %40 = vector.multi_reduction <minimumf>, %39, %cst_18 [2] : vector<1x16x16xf32> to vector<1x16xf32>
    %41 = vector.shape_cast %40 : vector<1x16xf32> to vector<1x16x1xf32>
    %42 = vector.broadcast %41 : vector<1x16x1xf32> to vector<1x16x16xf32>
    %43 = arith.cmpf ole, %39, %42 : vector<1x16x16xf32>
    %cst_19 = arith.constant 1.600000e+01 : f32
    %44 = vector.shape_cast %21 : vector<16x16xf32> to vector<1x16x16xf32>
    %45 = vector.broadcast %cst_19 : f32 to vector<1x16x16xf32>
    %46 = arith.select %43, %44, %45 : vector<1x16x16xi1>, vector<1x16x16xf32>
    %cst_20 = arith.constant dense<0x7F800000> : vector<1x16xf32>
    %47 = vector.multi_reduction <minimumf>, %46, %cst_20 [2] : vector<1x16x16xf32> to vector<1x16xf32>
    %48 = vector.shape_cast %47 : vector<1x16xf32> to vector<1x16x1xf32>
    %49 = vector.shape_cast %21 : vector<16x16xf32> to vector<1x16x16xf32>
    %50 = vector.broadcast %48 : vector<1x16x1xf32> to vector<1x16x16xf32>
    %51 = arith.cmpf oeq, %49, %50 : vector<1x16x16xf32>
    %52 = arith.extui %51 : vector<1x16x16xi1> to vector<1x16x16xi32>
    %53 = arith.sitofp %52 : vector<1x16x16xi32> to vector<1x16x16xf32>
    %cst_21 = arith.constant 0.000000e+00 : f32
    %54 = vector.broadcast %cst_21 : f32 to vector<1x16x16xf32>
    %55 = arith.cmpf ogt, %53, %54 : vector<1x16x16xf32>
    %cst_22 = arith.constant 0x7F800000 : f32
    %56 = vector.broadcast %cst_22 : f32 to vector<1x16x16xf32>
    %57 = arith.select %55, %56, %39 : vector<1x16x16xi1>, vector<1x16x16xf32>
    %cst_23 = arith.constant dense<0x7F800000> : vector<1x16xf32>
    %58 = vector.multi_reduction <minimumf>, %57, %cst_23 [2] : vector<1x16x16xf32> to vector<1x16xf32>
    %59 = vector.shape_cast %58 : vector<1x16xf32> to vector<1x16x1xf32>
    %60 = vector.broadcast %59 : vector<1x16x1xf32> to vector<1x16x16xf32>
    %61 = arith.cmpf ole, %57, %60 : vector<1x16x16xf32>
    %cst_24 = arith.constant 1.600000e+01 : f32
    %62 = vector.shape_cast %21 : vector<16x16xf32> to vector<1x16x16xf32>
    %63 = vector.broadcast %cst_24 : f32 to vector<1x16x16xf32>
    %64 = arith.select %61, %62, %63 : vector<1x16x16xi1>, vector<1x16x16xf32>
    %cst_25 = arith.constant dense<0x7F800000> : vector<1x16xf32>
    %65 = vector.multi_reduction <minimumf>, %64, %cst_25 [2] : vector<1x16x16xf32> to vector<1x16xf32>
    %66 = vector.shape_cast %65 : vector<1x16xf32> to vector<1x16x1xf32>
    %67 = vector.shape_cast %21 : vector<16x16xf32> to vector<1x16x16xf32>
    %68 = vector.broadcast %66 : vector<1x16x1xf32> to vector<1x16x16xf32>
    %69 = arith.cmpf oeq, %67, %68 : vector<1x16x16xf32>
    %70 = arith.extui %69 : vector<1x16x16xi1> to vector<1x16x16xi32>
    %71 = arith.sitofp %70 : vector<1x16x16xi32> to vector<1x16x16xf32>
    %cst_26 = arith.constant 0.000000e+00 : f32
    %72 = vector.broadcast %cst_26 : f32 to vector<1x16x16xf32>
    %73 = arith.cmpf ogt, %71, %72 : vector<1x16x16xf32>
    %cst_27 = arith.constant 0x7F800000 : f32
    %74 = vector.broadcast %cst_27 : f32 to vector<1x16x16xf32>
    %75 = arith.select %73, %74, %57 : vector<1x16x16xi1>, vector<1x16x16xf32>
    %cst_28 = arith.constant dense<0x7F800000> : vector<1x16xf32>
    %76 = vector.multi_reduction <minimumf>, %75, %cst_28 [2] : vector<1x16x16xf32> to vector<1x16xf32>
    %77 = vector.shape_cast %76 : vector<1x16xf32> to vector<1x16x1xf32>
    %78 = vector.broadcast %77 : vector<1x16x1xf32> to vector<1x16x16xf32>
    %79 = arith.cmpf ole, %75, %78 : vector<1x16x16xf32>
    %cst_29 = arith.constant 1.600000e+01 : f32
    %80 = vector.shape_cast %21 : vector<16x16xf32> to vector<1x16x16xf32>
    %81 = vector.broadcast %cst_29 : f32 to vector<1x16x16xf32>
    %82 = arith.select %79, %80, %81 : vector<1x16x16xi1>, vector<1x16x16xf32>
    %cst_30 = arith.constant dense<0x7F800000> : vector<1x16xf32>
    %83 = vector.multi_reduction <minimumf>, %82, %cst_30 [2] : vector<1x16x16xf32> to vector<1x16xf32>
    %84 = vector.shape_cast %83 : vector<1x16xf32> to vector<1x16x1xf32>
    %85 = vector.shape_cast %21 : vector<16x16xf32> to vector<1x16x16xf32>
    %86 = vector.broadcast %84 : vector<1x16x1xf32> to vector<1x16x16xf32>
    %87 = arith.cmpf oeq, %85, %86 : vector<1x16x16xf32>
    %88 = arith.extui %87 : vector<1x16x16xi1> to vector<1x16x16xi32>
    %89 = arith.sitofp %88 : vector<1x16x16xi32> to vector<1x16x16xf32>
    %cst_31 = arith.constant 0.000000e+00 : f32
    %90 = vector.broadcast %cst_31 : f32 to vector<1x16x16xf32>
    %91 = arith.cmpf ogt, %89, %90 : vector<1x16x16xf32>
    %cst_32 = arith.constant 0x7F800000 : f32
    %92 = vector.broadcast %cst_32 : f32 to vector<1x16x16xf32>
    %93 = arith.select %91, %92, %75 : vector<1x16x16xi1>, vector<1x16x16xf32>
    %cst_33 = arith.constant dense<0x7F800000> : vector<1x16xf32>
    %94 = vector.multi_reduction <minimumf>, %93, %cst_33 [2] : vector<1x16x16xf32> to vector<1x16xf32>
    %95 = vector.shape_cast %94 : vector<1x16xf32> to vector<1x16x1xf32>
    %96 = vector.broadcast %95 : vector<1x16x1xf32> to vector<1x16x16xf32>
    %97 = arith.cmpf ole, %93, %96 : vector<1x16x16xf32>
    %cst_34 = arith.constant 1.600000e+01 : f32
    %98 = vector.shape_cast %21 : vector<16x16xf32> to vector<1x16x16xf32>
    %99 = vector.broadcast %cst_34 : f32 to vector<1x16x16xf32>
    %100 = arith.select %97, %98, %99 : vector<1x16x16xi1>, vector<1x16x16xf32>
    %cst_35 = arith.constant dense<0x7F800000> : vector<1x16xf32>
    %101 = vector.multi_reduction <minimumf>, %100, %cst_35 [2] : vector<1x16x16xf32> to vector<1x16xf32>
    %102 = vector.shape_cast %101 : vector<1x16xf32> to vector<1x16x1xf32>
    %103 = vector.shape_cast %21 : vector<16x16xf32> to vector<1x16x16xf32>
    %104 = vector.broadcast %102 : vector<1x16x1xf32> to vector<1x16x16xf32>
    %105 = arith.cmpf oeq, %103, %104 : vector<1x16x16xf32>
    %106 = arith.extui %105 : vector<1x16x16xi1> to vector<1x16x16xi32>
    %107 = arith.sitofp %106 : vector<1x16x16xi32> to vector<1x16x16xf32>
    %108 = tpu.concatenate %35, %53, %71, %89, %107 in 1 : vector<1x16x16xf32>, vector<1x16x16xf32>, vector<1x16x16xf32>, vector<1x16x16xf32>, vector<1x16x16xf32> -> vector<1x80x16xf32>
    %cst_36 = arith.constant dense<0.000000e+00> : vector<1x80x32xf32>
    %109 = tpu.matmul %108, %19, %cst_36 {dimension_numbers = #tpu.dot_dimension_numbers<[2], [1], [1], [2], [0, 0, 0, 1, 1, 2], [0], [0]>} : vector<1x80x16xf32>, vector<1x16x32xf32>, vector<1x80x32xf32> -> vector<1x80x32xf32>
    %110 = vector.extract_strided_slice %109 {offsets = [0, 0, 0], sizes = [1, 16, 32], strides = [1, 1, 1]} : vector<1x80x32xf32> to vector<1x16x32xf32>
    %111 = vector.extract_strided_slice %109 {offsets = [0, 16, 0], sizes = [1, 16, 32], strides = [1, 1, 1]} : vector<1x80x32xf32> to vector<1x16x32xf32>
    %112 = arith.maximumf %110, %111 : vector<1x16x32xf32>
    %113 = vector.extract_strided_slice %109 {offsets = [0, 32, 0], sizes = [1, 16, 32], strides = [1, 1, 1]} : vector<1x80x32xf32> to vector<1x16x32xf32>
    %114 = arith.maximumf %112, %113 : vector<1x16x32xf32>
    %115 = vector.extract_strided_slice %109 {offsets = [0, 48, 0], sizes = [1, 16, 32], strides = [1, 1, 1]} : vector<1x80x32xf32> to vector<1x16x32xf32>
    %116 = arith.maximumf %114, %115 : vector<1x16x32xf32>
    %117 = vector.extract_strided_slice %109 {offsets = [0, 64, 0], sizes = [1, 16, 32], strides = [1, 1, 1]} : vector<1x80x32xf32> to vector<1x16x32xf32>
    %118 = arith.maximumf %116, %117 : vector<1x16x32xf32>
    %119 = vector.shape_cast %118 : vector<1x16x32xf32> to vector<16x32xf32>
    %120 = arith.addf %119, %18 : vector<16x32xf32>
    %121 = tpu.iota {dimensions = array<i32: 1>} : vector<1x16x32xi32>
    %122 = vector.shape_cast %121 : vector<1x16x32xi32> to vector<16x32xi32>
    %c0_i32 = arith.constant 0 : i32
    %123 = vector.broadcast %c0_i32 : i32 to vector<16x32xi32>
    %124 = arith.cmpi eq, %122, %123 : vector<16x32xi32>
    %c15_i32 = arith.constant 15 : i32
    %125 = vector.broadcast %c15_i32 : i32 to vector<16x32xi32>
    %126 = arith.cmpi eq, %122, %125 : vector<16x32xi32>
    %c1_i32 = arith.constant 1 : i32
    %127 = tpu.dynamic_rotate %1 by %c1_i32 dim 0 : vector<16x32xf32>, i32 -> vector<16x32xf32>
    %cst_37 = arith.constant 0.000000e+00 : f32
    %128 = vector.broadcast %cst_37 : f32 to vector<16x32xf32>
    %129 = arith.select %124, %128, %127 : vector<16x32xi1>, vector<16x32xf32>
    %c15_i32_38 = arith.constant 15 : i32
    %130 = tpu.dynamic_rotate %1 by %c15_i32_38 dim 0 : vector<16x32xf32>, i32 -> vector<16x32xf32>
    %cst_39 = arith.constant 0.000000e+00 : f32
    %131 = vector.broadcast %cst_39 : f32 to vector<16x32xf32>
    %132 = arith.select %126, %131, %130 : vector<16x32xi1>, vector<16x32xf32>
    %133 = tpu.concatenate %129, %1, %132 in 1 : vector<16x32xf32>, vector<16x32xf32>, vector<16x32xf32> -> vector<16x96xf32>
    %134 = arith.truncf %133 : vector<16x96xf32> to vector<16x96xbf16>
    %c0_40 = arith.constant 0 : index
    %c0_41 = arith.constant 0 : index
    %135 = vector.load %arg2[%c0_40, %c0_41] : memref<96x32xbf16, #tpu.memory_space<vmem>>, vector<96x32xbf16>
    %cst_42 = arith.constant dense<0.000000e+00> : vector<16x32xf32>
    %136 = tpu.matmul %134, %135, %cst_42 {dimension_numbers = #tpu.dot_dimension_numbers<[1], [0], [0], [1], [0, 0, 1, 1], [], []>} : vector<16x96xbf16>, vector<96x32xbf16>, vector<16x32xf32> -> vector<16x32xf32>
    %c0_43 = arith.constant 0 : index
    %c0_44 = arith.constant 0 : index
    %137 = vector.load %arg3[%c0_43, %c0_44] : memref<1x32xf32, #tpu.memory_space<vmem>>, vector<1x32xf32>
    %138 = vector.broadcast %137 : vector<1x32xf32> to vector<16x32xf32>
    %139 = arith.addf %136, %138 : vector<16x32xf32>
    %140 = arith.addf %139, %120 : vector<16x32xf32>
    %cst_45 = arith.constant 0.000000e+00 : f32
    %141 = vector.broadcast %cst_45 : f32 to vector<16x32xf32>
    %142 = arith.maximumf %140, %141 : vector<16x32xf32>
    %c1_i32_46 = arith.constant 1 : i32
    %143 = tpu.dynamic_rotate %142 by %c1_i32_46 dim 0 : vector<16x32xf32>, i32 -> vector<16x32xf32>
    %cst_47 = arith.constant 0.000000e+00 : f32
    %144 = vector.broadcast %cst_47 : f32 to vector<16x32xf32>
    %145 = arith.select %124, %144, %143 : vector<16x32xi1>, vector<16x32xf32>
    %c15_i32_48 = arith.constant 15 : i32
    %146 = tpu.dynamic_rotate %142 by %c15_i32_48 dim 0 : vector<16x32xf32>, i32 -> vector<16x32xf32>
    %cst_49 = arith.constant 0.000000e+00 : f32
    %147 = vector.broadcast %cst_49 : f32 to vector<16x32xf32>
    %148 = arith.select %126, %147, %146 : vector<16x32xi1>, vector<16x32xf32>
    %149 = arith.maximumf %145, %142 : vector<16x32xf32>
    %150 = arith.maximumf %149, %148 : vector<16x32xf32>
    %c0_50 = arith.constant 0 : index
    %c0_51 = arith.constant 0 : index
    %151 = vector.load %arg8[%c0_50, %c0_51] : memref<16x32xf32, #tpu.memory_space<vmem>>, vector<16x32xf32>
    tpu.vector_store %arg8[%c0_50, %c0_51], %150 {strides = array<i32>} : memref<16x32xf32, #tpu.memory_space<vmem>>, vector<16x32xf32>,
    %c0_52 = arith.constant 0 : index
    %c0_53 = arith.constant 0 : index
    %152 = tpu.strided_load %arg8[%c0_52, %c0_53] {strides = array<i32: 2, 1>} : memref<16x32xf32, #tpu.memory_space<vmem>>, vector<8x32xf32>
    %c0_54 = arith.constant 0 : index
    %c0_55 = arith.constant 0 : index
    %c0_56 = arith.constant 0 : index
    %153 = vector.load %arg7[%c0_54, %c0_55, %c0_56] : memref<1x8x32xf32, #tpu.memory_space<vmem>>, vector<1x8x32xf32>
    %154 = vector.shape_cast %153 : vector<1x8x32xf32> to vector<8x32xf32>
    %155 = vector.shape_cast %152 : vector<8x32xf32> to vector<1x8x32xf32>
    tpu.vector_store %arg7[%c0_54, %c0_55, %c0_56], %155 {strides = array<i32>} : memref<1x8x32xf32, #tpu.memory_space<vmem>>, vector<1x8x32xf32>,
    return
  }
  func.func @transform_0(%arg0: i32) -> (i32, i32, i32) {
    %c0_i32 = arith.constant 0 : i32
    %c0_i32_0 = arith.constant 0 : i32
    %c0_i32_1 = arith.constant 0 : i32
    return %arg0, %c0_i32, %c0_i32_0 : i32, i32, i32
  }
  func.func @transform_1(%arg0: i32) -> (i32, i32) {
    %c0_i32 = arith.constant 0 : i32
    %c0_i32_0 = arith.constant 0 : i32
    %c0_i32_1 = arith.constant 0 : i32
    return %c0_i32, %c0_i32_0 : i32, i32
  }
  func.func @transform_2(%arg0: i32) -> (i32, i32) {
    %c0_i32 = arith.constant 0 : i32
    %c0_i32_0 = arith.constant 0 : i32
    %c0_i32_1 = arith.constant 0 : i32
    return %c0_i32, %c0_i32_0 : i32, i32
  }
  func.func @transform_3(%arg0: i32) -> (i32, i32) {
    %c0_i32 = arith.constant 0 : i32
    %c0_i32_0 = arith.constant 0 : i32
    %c0_i32_1 = arith.constant 0 : i32
    return %c0_i32, %c0_i32_0 : i32, i32
  }
  func.func @transform_4(%arg0: i32) -> (i32, i32) {
    %c0_i32 = arith.constant 0 : i32
    %c0_i32_0 = arith.constant 0 : i32
    %c0_i32_1 = arith.constant 0 : i32
    return %c0_i32, %c0_i32_0 : i32, i32
  }
  func.func @transform_5(%arg0: i32) -> (i32, i32) {
    %c0_i32 = arith.constant 0 : i32
    %c0_i32_0 = arith.constant 0 : i32
    %c0_i32_1 = arith.constant 0 : i32
    return %c0_i32, %c0_i32_0 : i32, i32
  }
  func.func @transform_6(%arg0: i32) -> (i32, i32, i32) {
    %c0_i32 = arith.constant 0 : i32
    %c0_i32_0 = arith.constant 0 : i32
    %c0_i32_1 = arith.constant 0 : i32
    return %arg0, %c0_i32, %c0_i32_0 : i32, i32, i32
  }
}

</mosaic_0001>

<llo_original>
// kernel: tpu_custom_call.1
$region0: #{tpu_custom_call.1}
  #allocation0 [shape = 'u32[]', space=smem, size = 0x4, offset = 0x4, fixed_abs, tag = 'smem constant byte address 0x4 - core index']
  #allocation1 [shape = 'u32[144,128]{1,0:T(1,128)}', space=vmem, size = 0x12000, scoped, tag = 'internal scratch']
  #allocation2 [shape = 'f32[16,32]{1,0:T(8,128)}', space=vmem, size = 0x2000, scoped, tag = 'scratch operand']
  %s0 = inlined_call_operand.vmem [shape: f32[2,16,32], index: 0, kind: input, shape index: {}]
  %s1 = inlined_call_operand.vmem [shape: bf16[96,32], index: 1, kind: input, shape index: {}]
  %s2 = inlined_call_operand.vmem [shape: f32[1,32], index: 2, kind: input, shape index: {}]
  %s3 = inlined_call_operand.vmem [shape: bf16[32,32], index: 3, kind: input, shape index: {}]
  %s4 = inlined_call_operand.vmem [shape: bf16[32,32], index: 4, kind: input, shape index: {}]
  %s5 = inlined_call_operand.vmem [shape: f32[1,32], index: 5, kind: input, shape index: {}]
  %s6 = inlined_call_operand.hbm [shape: f32[2,8,32], index: 6, kind: output, shape index: {}]
  %s7 = sld [smem:[#allocation0]]
  $region57: #{tpu_custom_call.1} parent=0
    _
  %s9 = ssub.s32 1, %s7
  %s10 = scalar_select 0, %s9, %s7
  $region1: #{tpu_custom_call.1} parent=0
    #allocation3 [shape = 'u8[8192]{0}', space=vmem, size = 0x2000, scoped, tag = 'output window, operand 0']
    #allocation4 [shape = 's32[2]{0}', space=sflag, size = 0x8, scoped, tag = 'scoped memory for tpu_custom_call.1']
    %11 = vsyncpa [#allocation4], 0
    %s12 = scalar_lea.sflag [#allocation4], 1
    %13 = vsyncpa %s12, 0
    loop: start=0, step=1, limit=4
    $region2: #{tpu_custom_call.1} parent=1 // loop_pre_header
      _
    $region3: #{tpu_custom_call.1} parent=1 // loop_header
      %s15 = sphi 0, %s19
      %p16 = scmp.ge.s32.totalorder %s15, 4
      %s25 = sphi 0, %s27
      %s28 = sphi 0, %s25
      %s29 = sphi 0, %s28
      %s45 = sphi 0, %s29
      %s49 = sphi 0, %s49
      %s51 = sphi 0, %s49
      %s52 = sphi 0, %s51
      %s66 = sphi 0, %s52
      %s70 = sphi 0, %s70
      %s72 = sphi 0, %s70
      %s73 = sphi 0, %s72
      %s87 = sphi 0, %s73
      %s91 = sphi 0, %s91
      %s93 = sphi 0, %s91
      %s94 = sphi 0, %s93
      %s108 = sphi 0, %s94
      %s112 = sphi 0, %s112
      %s114 = sphi 0, %s112
      %s115 = sphi 0, %s114
      %s129 = sphi 0, %s115
      %s133 = sphi 0, %s133
      %s135 = sphi 0, %s133
      %s136 = sphi 0, %s135
      %s150 = sphi 0, %s136
      %s156 = sphi 0, %s158
      %s159 = sphi 0, %s156
      %s160 = sphi 0, %s159
      %s176 = sphi 0, %s160
    $region4: #{tpu_custom_call.1} parent=1 // loop_header_branch
      %18 = sbr.rel (%p16) target = $region8
    $region5: #{tpu_custom_call.1} parent=1 // loop_body
      %s20 = ssub.s32 %s15, 1
      %s21 = ssub.s32 %s15, 2
      %s22 = sadd.s32 %s15, 1
      %s23 = ssub.s32 %s15, %s22
      %p24 = scmp.eq.s32.totalorder %s23, 0
      %s26 = sadd.s32 %s25, 1
      %s27 = scalar_select %p24, %s25, %s26
      %p30 = pneg %p24
      %p31 = scmp.eq.s32.totalorder %s15, 1
      %p32 = por %p30, %p31
      %p33 = scmp.ne.s32.totalorder %s25, %s28
      %p34 = scmp.eq.s32.totalorder %s15, 0
      %p35 = por %p33, %p34
      %p36 = scmp.ne.s32.totalorder %s25, %s28
      %p37 = scmp.eq.s32.totalorder %s20, 1
      %p38 = por %p36, %p37
      %p39 = scmp.ne.s32.totalorder %s28, %s29
      %p40 = scmp.eq.s32.totalorder %s20, 0
      %p41 = por %p39, %p40
      %p42 = scmp.ne.s32.totalorder %s28, %s29
      %p43 = scmp.eq.s32.totalorder %s21, 1
      %p44 = por %p42, %p43
      %p46 = scmp.ne.s32.totalorder %s29, %s45
      %p47 = scmp.eq.s32.totalorder %s21, 0
      %p48 = por %p46, %p47
      %s50 = sadd.s32 %s49, 1
      %p53 = scmp.eq.s32.totalorder %s15, 1
      %p54 = scmp.ne.s32.totalorder %s49, %s51
      %p55 = scmp.eq.s32.totalorder %s15, 0
      %p56 = por %p54, %p55
      %p57 = scmp.ne.s32.totalorder %s49, %s51
      %p58 = scmp.eq.s32.totalorder %s20, 1
      %p59 = por %p57, %p58
      %p60 = scmp.ne.s32.totalorder %s51, %s52
      %p61 = scmp.eq.s32.totalorder %s20, 0
      %p62 = por %p60, %p61
      %p63 = scmp.ne.s32.totalorder %s51, %s52
      %p64 = scmp.eq.s32.totalorder %s21, 1
      %p65 = por %p63, %p64
      %p67 = scmp.ne.s32.totalorder %s52, %s66
      %p68 = scmp.eq.s32.totalorder %s21, 0
      %p69 = por %p67, %p68
      %s71 = sadd.s32 %s70, 1
      %p74 = scmp.eq.s32.totalorder %s15, 1
      %p75 = scmp.ne.s32.totalorder %s70, %s72
      %p76 = scmp.eq.s32.totalorder %s15, 0
      %p77 = por %p75, %p76
      %p78 = scmp.ne.s32.totalorder %s70, %s72
      %p79 = scmp.eq.s32.totalorder %s20, 1
      %p80 = por %p78, %p79
      %p81 = scmp.ne.s32.totalorder %s72, %s73
      %p82 = scmp.eq.s32.totalorder %s20, 0
      %p83 = por %p81, %p82
      %p84 = scmp.ne.s32.totalorder %s72, %s73
      %p85 = scmp.eq.s32.totalorder %s21, 1
      %p86 = por %p84, %p85
      %p88 = scmp.ne.s32.totalorder %s73, %s87
      %p89 = scmp.eq.s32.totalorder %s21, 0
      %p90 = por %p88, %p89
      %s92 = sadd.s32 %s91, 1
      %p95 = scmp.eq.s32.totalorder %s15, 1
      %p96 = scmp.ne.s32.totalorder %s91, %s93
      %p97 = scmp.eq.s32.totalorder %s15, 0
      %p98 = por %p96, %p97
      %p99 = scmp.ne.s32.totalorder %s91, %s93
      %p100 = scmp.eq.s32.totalorder %s20, 1
      %p101 = por %p99, %p100
      %p102 = scmp.ne.s32.totalorder %s93, %s94
      %p103 = scmp.eq.s32.totalorder %s20, 0
      %p104 = por %p102, %p103
      %p105 = scmp.ne.s32.totalorder %s93, %s94
      %p106 = scmp.eq.s32.totalorder %s21, 1
      %p107 = por %p105, %p106
      %p109 = scmp.ne.s32.totalorder %s94, %s108
      %p110 = scmp.eq.s32.totalorder %s21, 0
      %p111 = por %p109, %p110
      %s113 = sadd.s32 %s112, 1
      %p116 = scmp.eq.s32.totalorder %s15, 1
      %p117 = scmp.ne.s32.totalorder %s112, %s114
      %p118 = scmp.eq.s32.totalorder %s15, 0
      %p119 = por %p117, %p118
      %p120 = scmp.ne.s32.totalorder %s112, %s114
      %p121 = scmp.eq.s32.totalorder %s20, 1
      %p122 = por %p120, %p121
      %p123 = scmp.ne.s32.totalorder %s114, %s115
      %p124 = scmp.eq.s32.totalorder %s20, 0
      %p125 = por %p123, %p124
      %p126 = scmp.ne.s32.totalorder %s114, %s115
      %p127 = scmp.eq.s32.totalorder %s21, 1
      %p128 = por %p126, %p127
      %p130 = scmp.ne.s32.totalorder %s115, %s129
      %p131 = scmp.eq.s32.totalorder %s21, 0
      %p132 = por %p130, %p131
      %s134 = sadd.s32 %s133, 1
      %p137 = scmp.eq.s32.totalorder %s15, 1
      %p138 = scmp.ne.s32.totalorder %s133, %s135
      %p139 = scmp.eq.s32.totalorder %s15, 0
      %p140 = por %p138, %p139
      %p141 = scmp.ne.s32.totalorder %s133, %s135
      %p142 = scmp.eq.s32.totalorder %s20, 1
      %p143 = por %p141, %p142
      %p144 = scmp.ne.s32.totalorder %s135, %s136
      %p145 = scmp.eq.s32.totalorder %s20, 0
      %p146 = por %p144, %p145
      %p147 = scmp.ne.s32.totalorder %s135, %s136
      %p148 = scmp.eq.s32.totalorder %s21, 1
      %p149 = por %p147, %p148
      %p151 = scmp.ne.s32.totalorder %s136, %s150
      %p152 = scmp.eq.s32.totalorder %s21, 0
      %p153 = por %p151, %p152
      %s154 = ssub.s32 %s15, %s22
      %p155 = scmp.eq.s32.totalorder %s154, 0
      %s157 = sadd.s32 %s156, 1
      %s158 = scalar_select %p155, %s156, %s157
      %p161 = pneg %p155
      %p162 = scmp.eq.s32.totalorder %s15, 1
      %p163 = por %p161, %p162
      %p164 = scmp.ne.s32.totalorder %s156, %s159
      %p165 = scmp.eq.s32.totalorder %s15, 0
      %p166 = por %p164, %p165
      %p167 = scmp.ne.s32.totalorder %s156, %s159
      %p168 = scmp.eq.s32.totalorder %s20, 1
      %p169 = por %p167, %p168
      %p170 = scmp.ne.s32.totalorder %s159, %s160
      %p171 = scmp.eq.s32.totalorder %s20, 0
      %p172 = por %p170, %p171
      %p173 = scmp.ne.s32.totalorder %s159, %s160
      %p174 = scmp.eq.s32.totalorder %s21, 1
      %p175 = por %p173, %p174
      %p177 = scmp.ne.s32.totalorder %s160, %s176
      %p178 = scmp.eq.s32.totalorder %s21, 0
      %p179 = por %p177, %p178
      %p180 = scmp.le.s32.totalorder 1, %s15
      %p181 = scmp.lt.s32.totalorder %s15, 3
      %p182 = pnand %p180, %p181
      %p183 = pneg %p182
      // Predicated region
      $region9: #{tpu_custom_call.1} parent=5 // pred_check
        _
      $region10: #{tpu_custom_call.1} parent=5 // pred_check_branch
        %185 = sbr.rel (%p182) target = $region12
      $region11: #{tpu_custom_call.1} parent=5 // pred_region
        %s186 = ssub.s32 %s15, 1
        // Predicated region
        $region13: #{tpu_custom_call.1} parent=11 // pred_check
          %p187 = pneg %p62
        $region14: #{tpu_custom_call.1} parent=11 // pred_check_branch
          %189 = sbr.rel (%p187) target = $region16
        $region15: #{tpu_custom_call.1} parent=11 // pred_region
          _
        $region16: #{tpu_custom_call.1} parent=11 // pred_fallthru
          _
        // Predicated region
        $region17: #{tpu_custom_call.1} parent=11 // pred_check
          %p190 = pneg %p83
        $region18: #{tpu_custom_call.1} parent=11 // pred_check_branch
          %192 = sbr.rel (%p190) target = $region20
        $region19: #{tpu_custom_call.1} parent=11 // pred_region
          _
        $region20: #{tpu_custom_call.1} parent=11 // pred_fallthru
          _
        // Predicated region
        $region21: #{tpu_custom_call.1} parent=11 // pred_check
          %p193 = pneg %p104
        $region22: #{tpu_custom_call.1} parent=11 // pred_check_branch
          %195 = sbr.rel (%p193) target = $region24
        $region23: #{tpu_custom_call.1} parent=11 // pred_region
          _
        $region24: #{tpu_custom_call.1} parent=11 // pred_fallthru
          _
        // Predicated region
        $region25: #{tpu_custom_call.1} parent=11 // pred_check
          %p196 = pneg %p125
        $region26: #{tpu_custom_call.1} parent=11 // pred_check_branch
          %198 = sbr.rel (%p196) target = $region28
        $region27: #{tpu_custom_call.1} parent=11 // pred_region
          _
        $region28: #{tpu_custom_call.1} parent=11 // pred_fallthru
          _
        // Predicated region
        $region29: #{tpu_custom_call.1} parent=11 // pred_check
          %p199 = pneg %p146
        $region30: #{tpu_custom_call.1} parent=11 // pred_check_branch
          %201 = sbr.rel (%p199) target = $region32
        $region31: #{tpu_custom_call.1} parent=11 // pred_region
          _
        $region32: #{tpu_custom_call.1} parent=11 // pred_fallthru
          _
      $region12: #{tpu_custom_call.1} parent=5 // pred_fallthru
        _
      %p202 = scmp.lt.s32.totalorder %s15, 2
      // Predicated region
      $region33: #{tpu_custom_call.1} parent=5 // pred_check
        %p203 = pneg %p202
      $region34: #{tpu_custom_call.1} parent=5 // pred_check_branch
        %205 = sbr.rel (%p203) target = $region36
      $region35: #{tpu_custom_call.1} parent=5 // pred_region
        // Predicated region
        $region37: #{tpu_custom_call.1} parent=35 // pred_check
          %p206 = pneg %p35
        $region38: #{tpu_custom_call.1} parent=35 // pred_check_branch
          %208 = sbr.rel (%p206) target = $region40
        $region39: #{tpu_custom_call.1} parent=35 // pred_region
          %p209 = scmp.lt.s32.totalorder %s15, 1
          %s210 = scalar_select %p209, %s15, 1
          %s211 = smul.addr %s210, 2
          %s212 = smul.addr %s211, 8
          %s213 = scalar_lea.vmem %s0, %s212
        $region40: #{tpu_custom_call.1} parent=35 // pred_fallthru
          _
      $region36: #{tpu_custom_call.1} parent=5 // pred_fallthru
        _
      %p214 = scmp.le.s32.totalorder 1, %s15
      %p215 = scmp.lt.s32.totalorder %s15, 3
      %p216 = pnand %p214, %p215
      %p217 = pneg %p216
      // Predicated region
      $region41: #{tpu_custom_call.1} parent=5 // pred_check
        _
      $region42: #{tpu_custom_call.1} parent=5 // pred_check_branch
        %219 = sbr.rel (%p216) target = $region44
      $region43: #{tpu_custom_call.1} parent=5 // pred_region
        %s220 = ssub.s32 %s15, 1
        %p221 = scmp.lt.s32.totalorder %s20, 1
        %s222 = scalar_select %p221, %s20, 1
        %s223 = smul.addr %s222, 2
        %s224 = smul.addr %s223, 8
        %s225 = scalar_lea.vmem %s0, %s224
        %p226 = pneg %p41
        %p227 = pneg %p38
        %p228 = pneg %p62
        %p229 = pneg %p59
        %p230 = pneg %p83
        %p231 = pneg %p80
        %p232 = pneg %p104
        %p233 = pneg %p101
        %p234 = pneg %p125
        %p235 = pneg %p122
        %p236 = pneg %p146
        %p237 = pneg %p143
        %p238 = pneg %p172
        %p239 = pneg %p169
        %s240 = sand.u32 %s159, 1
        %s241 = scalar_lea.sflag [#allocation4], %s240
        %s242 = sand.u32 %s159, 1
        %s243 = smul.addr %s242, 8
        %s244 = scalar_lea.vmem [#allocation3], %s243
        %p245 = scmp.lt.s32.totalorder %s20, 1
        %s246 = scalar_select %p245, %s20, 1
        %s247 = smul.addr %s246, 2
        %s248 = smul.addr %s247, 8
        %s249 = scalar_lea.vmem %s0, %s248
        %v251 = vld [vmem:[%s249] sm:$0xff]
        %v252 = vld [vmem:[%s249 + $0x8] sm:$0xff]
        %v253 = vpack.c.bf16 %v252, %v251
        %v254 = vmul.f32 %v251, %v251
        %v255 = vmul.f32 %v252, %v252
        %vm256 = vcmask 261120
        %v257 = vsel %vm256, %v254, 0.0
        %258 = vadd.xlane.f32.xlu0 %v257
        %v259 = vpop.xlane.xlu0 %258
        %v260 = vsel %vm256, %v255, 0.0
        %261 = vadd.xlane.f32.xlu0 %v260
        %v262 = vpop.xlane.xlu0 %261
        %v263 = vsel %vm256, %v251, 1.0
        %v264 = vsel %vm256, %v252, 1.0
        %v265 = vmul.f32 %v251, -2.0
        %v266 = vmul.f32 %v252, -2.0
        %v267 = vsel %vm256, %v265, %v259
        %v268 = vsel %vm256, %v266, %v262
        %vm269 = vcmask 269312
        %v271 = vsel %vm269, %v263, 0
        %v274 = vsel %vm269, %v264, 0
        %v277 = vsel %vm269, %v267, 0
        %v280 = vsel %vm269, %v268, 0
        %282 = vmatprep.subr.mxu0 0.0
        %283 = vmatpush1.xpose.msra.mxu0 0.0
        %284 = vmatprep.subr.mxu0 0.0
        %285 = vmatpush1.xpose.msra.mxu0 0.0
        %286 = vmatprep.subr.mxu0 0.0
        %287 = vmatpush1.xpose.msra.mxu0 0.0
        %288 = vmatprep.subr.mxu0 0.0
        %289 = vmatpush1.xpose.msra.mxu0 0.0
        %290 = vmatprep.subr.mxu0 0.0
        %291 = vmatpush1.xpose.msra.mxu0 0.0
        %292 = vmatprep.subr.mxu0 0.0
        %293 = vmatpush1.xpose.msra.mxu0 0.0
        %294 = vmatprep.subr.mxu0 0.0
        %295 = vmatpush1.xpose.msra.mxu0 0.0
        %296 = vmatprep.subr.mxu0 0.0
        %297 = vmatpush1.xpose.msra.mxu0 0.0
        %298 = vmatprep.subr.mxu0 0.0
        %299 = vmatpush1.xpose.msra.mxu0 0.0
        %300 = vmatprep.subr.mxu0 0.0
        %301 = vmatpush1.xpose.msra.mxu0 0.0
        %302 = vmatprep.subr.mxu0 0.0
        %303 = vmatpush1.xpose.msra.mxu0 0.0
        %304 = vmatprep.subr.mxu0 0.0
        %305 = vmatpush1.xpose.msra.mxu0 0.0
        %306 = vmatprep.subr.mxu0 0.0
        %307 = vmatpush1.xpose.msra.mxu0 0.0
        %308 = vmatprep.subr.mxu0 0.0
        %309 = vmatpush1.xpose.msra.mxu0 0.0
        %310 = vmatprep.subr.mxu0 0.0
        %v311 = vand.u32 %v280, 4294901760
        %312 = vmatpush1.xpose.msra.mxu0 %v311
        %313 = vmatprep.subr.mxu0 0.0
        %v314 = vand.u32 %v277, 4294901760
        %315 = vmatpush1.xpose.msra.mxu0 %v314
        %316 = vmatprep.subr.mxu0 0.0
        %317 = vmatpush2.xpose.msra.mxu0 0.0
        %318 = vmatprep.subr.mxu0 0.0
        %319 = vmatpush2.xpose.msra.mxu0 0.0
        %320 = vmatprep.subr.mxu0 0.0
        %321 = vmatpush2.xpose.msra.mxu0 0.0
        %322 = vmatprep.subr.mxu0 0.0
        %323 = vmatpush2.xpose.msra.mxu0 0.0
        %324 = vmatprep.subr.mxu0 0.0
        %325 = vmatpush2.xpose.msra.mxu0 0.0
        %326 = vmatprep.subr.mxu0 0.0
        %327 = vmatpush2.xpose.msra.mxu0 0.0
        %328 = vmatprep.subr.mxu0 0.0
        %329 = vmatpush2.xpose.msra.mxu0 0.0
        %330 = vmatprep.subr.mxu0 0.0
        %331 = vmatpush2.xpose.msra.mxu0 0.0
        %332 = vmatprep.subr.mxu0 0.0
        %333 = vmatpush2.xpose.msra.mxu0 0.0
        %334 = vmatprep.subr.mxu0 0.0
        %335 = vmatpush2.xpose.msra.mxu0 0.0
        %336 = vmatprep.subr.mxu0 0.0
        %337 = vmatpush2.xpose.msra.mxu0 0.0
        %338 = vmatprep.subr.mxu0 0.0
        %339 = vmatpush2.xpose.msra.mxu0 0.0
        %340 = vmatprep.subr.mxu0 0.0
        %341 = vmatpush2.xpose.msra.mxu0 0.0
        %342 = vmatprep.subr.mxu0 0.0
        %343 = vmatpush2.xpose.msra.mxu0 0.0
        %344 = vmatprep.subr.mxu0 0.0
        %345 = vmatpush2.xpose.msra.mxu0 0.0
        %346 = vmatprep.subr.mxu0 0.0
        %347 = vmatpush2.xpose.msra.mxu0 0.0
        %348 = vmatprep.mubr.f32.mxu0 0.0
        %v349 = vand.u32 %v271, 4294901760
        %v350 = vsub.f32 %v271, %v349
        %v351 = vand.u32 %v350, 4294901760
        %v352 = vsub.f32 %v350, %v351
        %v353 = vand.u32 %v352, 4294901760
        %354 = vmatmul.mubr.f32.gmra.mxu0 %v353
        %v355 = vpop.f32.mrf.mxu0
        %v356 = vadd.f32 0.0, %v355
        %v357 = vpop.f32.mrf.mxu0
        %358 = vmatprep.mubr.f32.mxu0 0.0
        %v359 = vand.u32 %v274, 4294901760
        %v360 = vsub.f32 %v274, %v359
        %v361 = vand.u32 %v360, 4294901760
        %v362 = vsub.f32 %v360, %v361
        %v363 = vand.u32 %v362, 4294901760
        %364 = vmatmul.mubr.f32.gmra.mxu0 %v363
        %v365 = vpop.f32.mrf.mxu0
        %v366 = vadd.f32 0.0, %v365
        %v367 = vpop.f32.mrf.mxu0
        %368 = vdwg.mxu0
        %369 = vmatprep.subr.mxu0 0.0
        %370 = vmatpush1.xpose.msra.mxu0 0.0
        %371 = vmatprep.subr.mxu0 0.0
        %372 = vmatpush1.xpose.msra.mxu0 0.0
        %373 = vmatprep.subr.mxu0 0.0
        %374 = vmatpush1.xpose.msra.mxu0 0.0
        %375 = vmatprep.subr.mxu0 0.0
        %376 = vmatpush1.xpose.msra.mxu0 0.0
        %377 = vmatprep.subr.mxu0 0.0
        %378 = vmatpush1.xpose.msra.mxu0 0.0
        %379 = vmatprep.subr.mxu0 0.0
        %380 = vmatpush1.xpose.msra.mxu0 0.0
        %381 = vmatprep.subr.mxu0 0.0
        %382 = vmatpush1.xpose.msra.mxu0 0.0
        %383 = vmatprep.subr.mxu0 0.0
        %384 = vmatpush1.xpose.msra.mxu0 0.0
        %385 = vmatprep.subr.mxu0 0.0
        %386 = vmatpush1.xpose.msra.mxu0 0.0
        %387 = vmatprep.subr.mxu0 0.0
        %388 = vmatpush1.xpose.msra.mxu0 0.0
        %389 = vmatprep.subr.mxu0 0.0
        %390 = vmatpush1.xpose.msra.mxu0 0.0
        %391 = vmatprep.subr.mxu0 0.0
        %392 = vmatpush1.xpose.msra.mxu0 0.0
        %393 = vmatprep.subr.mxu0 0.0
        %394 = vmatpush1.xpose.msra.mxu0 0.0
        %395 = vmatprep.subr.mxu0 0.0
        %396 = vmatpush1.xpose.msra.mxu0 0.0
        %397 = vmatprep.subr.mxu0 0.0
        %v398 = vand.u32 %v280, 4294901760
        %v399 = vsub.f32 %v280, %v398
        %v400 = vand.u32 %v399, 4294901760
        %v401 = vsub.f32 %v399, %v400
        %v402 = vand.u32 %v401, 4294901760
        %403 = vmatpush1.xpose.msra.mxu0 %v402
        %404 = vmatprep.subr.mxu0 0.0
        %v405 = vand.u32 %v277, 4294901760
        %v406 = vsub.f32 %v277, %v405
        %v407 = vand.u32 %v406, 4294901760
        %v408 = vsub.f32 %v406, %v407
        %v409 = vand.u32 %v408, 4294901760
        %410 = vmatpush1.xpose.msra.mxu0 %v409
        %411 = vmatprep.subr.mxu0 0.0
        %412 = vmatpush2.xpose.msra.mxu0 0.0
        %413 = vmatprep.subr.mxu0 0.0
        %414 = vmatpush2.xpose.msra.mxu0 0.0
        %415 = vmatprep.subr.mxu0 0.0
        %416 = vmatpush2.xpose.msra.mxu0 0.0
        %417 = vmatprep.subr.mxu0 0.0
        %418 = vmatpush2.xpose.msra.mxu0 0.0
        %419 = vmatprep.subr.mxu0 0.0
        %420 = vmatpush2.xpose.msra.mxu0 0.0
        %421 = vmatprep.subr.mxu0 0.0
        %422 = vmatpush2.xpose.msra.mxu0 0.0
        %423 = vmatprep.subr.mxu0 0.0
        %424 = vmatpush2.xpose.msra.mxu0 0.0
        %425 = vmatprep.subr.mxu0 0.0
        %426 = vmatpush2.xpose.msra.mxu0 0.0
        %427 = vmatprep.subr.mxu0 0.0
        %428 = vmatpush2.xpose.msra.mxu0 0.0
        %429 = vmatprep.subr.mxu0 0.0
        %430 = vmatpush2.xpose.msra.mxu0 0.0
        %431 = vmatprep.subr.mxu0 0.0
        %432 = vmatpush2.xpose.msra.mxu0 0.0
        %433 = vmatprep.subr.mxu0 0.0
        %434 = vmatpush2.xpose.msra.mxu0 0.0
        %435 = vmatprep.subr.mxu0 0.0
        %436 = vmatpush2.xpose.msra.mxu0 0.0
        %437 = vmatprep.subr.mxu0 0.0
        %438 = vmatpush2.xpose.msra.mxu0 0.0
        %439 = vmatprep.subr.mxu0 0.0
        %440 = vmatpush2.xpose.msra.mxu0 0.0
        %441 = vmatprep.subr.mxu0 0.0
        %442 = vmatpush2.xpose.msra.mxu0 0.0
        %443 = vmatprep.mubr.f32.mxu0 0.0
        %v444 = vand.u32 %v271, 4294901760
        %445 = vmatmul.mubr.f32.gmra.mxu0 %v444
        %v446 = vpop.f32.mrf.mxu0
        %v447 = vadd.f32 %v356, %v446
        %v448 = vpop.f32.mrf.mxu0
        %449 = vmatprep.mubr.f32.mxu0 0.0
        %v450 = vand.u32 %v274, 4294901760
        %451 = vmatmul.mubr.f32.gmra.mxu0 %v450
        %v452 = vpop.f32.mrf.mxu0
        %v453 = vadd.f32 %v366, %v452
        %v454 = vpop.f32.mrf.mxu0
        %455 = vdwg.mxu0
        %456 = vmatprep.subr.mxu0 0.0
        %457 = vmatpush1.xpose.msra.mxu0 0.0
        %458 = vmatprep.subr.mxu0 0.0
        %459 = vmatpush1.xpose.msra.mxu0 0.0
        %460 = vmatprep.subr.mxu0 0.0
        %461 = vmatpush1.xpose.msra.mxu0 0.0
        %462 = vmatprep.subr.mxu0 0.0
        %463 = vmatpush1.xpose.msra.mxu0 0.0
        %464 = vmatprep.subr.mxu0 0.0
        %465 = vmatpush1.xpose.msra.mxu0 0.0
        %466 = vmatprep.subr.mxu0 0.0
        %467 = vmatpush1.xpose.msra.mxu0 0.0
        %468 = vmatprep.subr.mxu0 0.0
        %469 = vmatpush1.xpose.msra.mxu0 0.0
        %470 = vmatprep.subr.mxu0 0.0
        %471 = vmatpush1.xpose.msra.mxu0 0.0
        %472 = vmatprep.subr.mxu0 0.0
        %473 = vmatpush1.xpose.msra.mxu0 0.0
        %474 = vmatprep.subr.mxu0 0.0
        %475 = vmatpush1.xpose.msra.mxu0 0.0
        %476 = vmatprep.subr.mxu0 0.0
        %477 = vmatpush1.xpose.msra.mxu0 0.0
        %478 = vmatprep.subr.mxu0 0.0
        %479 = vmatpush1.xpose.msra.mxu0 0.0
        %480 = vmatprep.subr.mxu0 0.0
        %481 = vmatpush1.xpose.msra.mxu0 0.0
        %482 = vmatprep.subr.mxu0 0.0
        %483 = vmatpush1.xpose.msra.mxu0 0.0
        %484 = vmatprep.subr.mxu0 0.0
        %v485 = vand.u32 %v280, 4294901760
        %v486 = vsub.f32 %v280, %v485
        %487 = vmatpush1.xpose.msra.mxu0 %v486
        %488 = vmatprep.subr.mxu0 0.0
        %v489 = vand.u32 %v277, 4294901760
        %v490 = vsub.f32 %v277, %v489
        %491 = vmatpush1.xpose.msra.mxu0 %v490
        %492 = vmatprep.subr.mxu0 0.0
        %493 = vmatpush2.xpose.msra.mxu0 0.0
        %494 = vmatprep.subr.mxu0 0.0
        %495 = vmatpush2.xpose.msra.mxu0 0.0
        %496 = vmatprep.subr.mxu0 0.0
        %497 = vmatpush2.xpose.msra.mxu0 0.0
        %498 = vmatprep.subr.mxu0 0.0
        %499 = vmatpush2.xpose.msra.mxu0 0.0
        %500 = vmatprep.subr.mxu0 0.0
        %501 = vmatpush2.xpose.msra.mxu0 0.0
        %502 = vmatprep.subr.mxu0 0.0
        %503 = vmatpush2.xpose.msra.mxu0 0.0
        %504 = vmatprep.subr.mxu0 0.0
        %505 = vmatpush2.xpose.msra.mxu0 0.0
        %506 = vmatprep.subr.mxu0 0.0
        %507 = vmatpush2.xpose.msra.mxu0 0.0
        %508 = vmatprep.subr.mxu0 0.0
        %509 = vmatpush2.xpose.msra.mxu0 0.0
        %510 = vmatprep.subr.mxu0 0.0
        %511 = vmatpush2.xpose.msra.mxu0 0.0
        %512 = vmatprep.subr.mxu0 0.0
        %513 = vmatpush2.xpose.msra.mxu0 0.0
        %514 = vmatprep.subr.mxu0 0.0
        %515 = vmatpush2.xpose.msra.mxu0 0.0
        %516 = vmatprep.subr.mxu0 0.0
        %517 = vmatpush2.xpose.msra.mxu0 0.0
        %518 = vmatprep.subr.mxu0 0.0
        %519 = vmatpush2.xpose.msra.mxu0 0.0
        %520 = vmatprep.subr.mxu0 0.0
        %521 = vmatpush2.xpose.msra.mxu0 0.0
        %522 = vmatprep.subr.mxu0 0.0
        %523 = vmatpush2.xpose.msra.mxu0 0.0
        %524 = vmatprep.mubr.f32.mxu0 0.0
        %v525 = vand.u32 %v271, 4294901760
        %v526 = vsub.f32 %v271, %v525
        %527 = vmatmul.mubr.f32.gmra.mxu0 %v526
        %v528 = vpop.f32.mrf.mxu0
        %v529 = vadd.f32 %v447, %v528
        %v530 = vpop.f32.mrf.mxu0
        %531 = vmatprep.mubr.f32.mxu0 0.0
        %v532 = vand.u32 %v274, 4294901760
        %v533 = vsub.f32 %v274, %v532
        %534 = vmatmul.mubr.f32.gmra.mxu0 %v533
        %v535 = vpop.f32.mrf.mxu0
        %v536 = vadd.f32 %v453, %v535
        %v537 = vpop.f32.mrf.mxu0
        %538 = vdwg.mxu0
        %539 = vmatprep.subr.mxu0 0.0
        %540 = vmatpush1.xpose.msra.mxu0 0.0
        %541 = vmatprep.subr.mxu0 0.0
        %542 = vmatpush1.xpose.msra.mxu0 0.0
        %543 = vmatprep.subr.mxu0 0.0
        %544 = vmatpush1.xpose.msra.mxu0 0.0
        %545 = vmatprep.subr.mxu0 0.0
        %546 = vmatpush1.xpose.msra.mxu0 0.0
        %547 = vmatprep.subr.mxu0 0.0
        %548 = vmatpush1.xpose.msra.mxu0 0.0
        %549 = vmatprep.subr.mxu0 0.0
        %550 = vmatpush1.xpose.msra.mxu0 0.0
        %551 = vmatprep.subr.mxu0 0.0
        %552 = vmatpush1.xpose.msra.mxu0 0.0
        %553 = vmatprep.subr.mxu0 0.0
        %554 = vmatpush1.xpose.msra.mxu0 0.0
        %555 = vmatprep.subr.mxu0 0.0
        %556 = vmatpush1.xpose.msra.mxu0 0.0
        %557 = vmatprep.subr.mxu0 0.0
        %558 = vmatpush1.xpose.msra.mxu0 0.0
        %559 = vmatprep.subr.mxu0 0.0
        %560 = vmatpush1.xpose.msra.mxu0 0.0
        %561 = vmatprep.subr.mxu0 0.0
        %562 = vmatpush1.xpose.msra.mxu0 0.0
        %563 = vmatprep.subr.mxu0 0.0
        %564 = vmatpush1.xpose.msra.mxu0 0.0
        %565 = vmatprep.subr.mxu0 0.0
        %566 = vmatpush1.xpose.msra.mxu0 0.0
        %567 = vmatprep.subr.mxu0 0.0
        %v568 = vand.u32 %v280, 4294901760
        %569 = vmatpush1.xpose.msra.mxu0 %v568
        %570 = vmatprep.subr.mxu0 0.0
        %v571 = vand.u32 %v277, 4294901760
        %572 = vmatpush1.xpose.msra.mxu0 %v571
        %573 = vmatprep.subr.mxu0 0.0
        %574 = vmatpush2.xpose.msra.mxu0 0.0
        %575 = vmatprep.subr.mxu0 0.0
        %576 = vmatpush2.xpose.msra.mxu0 0.0
        %577 = vmatprep.subr.mxu0 0.0
        %578 = vmatpush2.xpose.msra.mxu0 0.0
        %579 = vmatprep.subr.mxu0 0.0
        %580 = vmatpush2.xpose.msra.mxu0 0.0
        %581 = vmatprep.subr.mxu0 0.0
        %582 = vmatpush2.xpose.msra.mxu0 0.0
        %583 = vmatprep.subr.mxu0 0.0
        %584 = vmatpush2.xpose.msra.mxu0 0.0
        %585 = vmatprep.subr.mxu0 0.0
        %586 = vmatpush2.xpose.msra.mxu0 0.0
        %587 = vmatprep.subr.mxu0 0.0
        %588 = vmatpush2.xpose.msra.mxu0 0.0
        %589 = vmatprep.subr.mxu0 0.0
        %590 = vmatpush2.xpose.msra.mxu0 0.0
        %591 = vmatprep.subr.mxu0 0.0
        %592 = vmatpush2.xpose.msra.mxu0 0.0
        %593 = vmatprep.subr.mxu0 0.0
        %594 = vmatpush2.xpose.msra.mxu0 0.0
        %595 = vmatprep.subr.mxu0 0.0
        %596 = vmatpush2.xpose.msra.mxu0 0.0
        %597 = vmatprep.subr.mxu0 0.0
        %598 = vmatpush2.xpose.msra.mxu0 0.0
        %599 = vmatprep.subr.mxu0 0.0
        %600 = vmatpush2.xpose.msra.mxu0 0.0
        %601 = vmatprep.subr.mxu0 0.0
        %602 = vmatpush2.xpose.msra.mxu0 0.0
        %603 = vmatprep.subr.mxu0 0.0
        %604 = vmatpush2.xpose.msra.mxu0 0.0
        %605 = vmatprep.mubr.f32.mxu0 0.0
        %v606 = vand.u32 %v271, 4294901760
        %v607 = vsub.f32 %v271, %v606
        %v608 = vand.u32 %v607, 4294901760
        %609 = vmatmul.mubr.f32.gmra.mxu0 %v608
        %v610 = vpop.f32.mrf.mxu0
        %v611 = vadd.f32 %v529, %v610
        %v612 = vpop.f32.mrf.mxu0
        %613 = vmatprep.mubr.f32.mxu0 0.0
        %v614 = vand.u32 %v274, 4294901760
        %v615 = vsub.f32 %v274, %v614
        %v616 = vand.u32 %v615, 4294901760
        %617 = vmatmul.mubr.f32.gmra.mxu0 %v616
        %v618 = vpop.f32.mrf.mxu0
        %v619 = vadd.f32 %v536, %v618
        %v620 = vpop.f32.mrf.mxu0
        %621 = vdwg.mxu0
        %622 = vmatprep.subr.mxu0 0.0
        %623 = vmatpush1.xpose.msra.mxu0 0.0
        %624 = vmatprep.subr.mxu0 0.0
        %625 = vmatpush1.xpose.msra.mxu0 0.0
        %626 = vmatprep.subr.mxu0 0.0
        %627 = vmatpush1.xpose.msra.mxu0 0.0
        %628 = vmatprep.subr.mxu0 0.0
        %629 = vmatpush1.xpose.msra.mxu0 0.0
        %630 = vmatprep.subr.mxu0 0.0
        %631 = vmatpush1.xpose.msra.mxu0 0.0
        %632 = vmatprep.subr.mxu0 0.0
        %633 = vmatpush1.xpose.msra.mxu0 0.0
        %634 = vmatprep.subr.mxu0 0.0
        %635 = vmatpush1.xpose.msra.mxu0 0.0
        %636 = vmatprep.subr.mxu0 0.0
        %637 = vmatpush1.xpose.msra.mxu0 0.0
        %638 = vmatprep.subr.mxu0 0.0
        %639 = vmatpush1.xpose.msra.mxu0 0.0
        %640 = vmatprep.subr.mxu0 0.0
        %641 = vmatpush1.xpose.msra.mxu0 0.0
        %642 = vmatprep.subr.mxu0 0.0
        %643 = vmatpush1.xpose.msra.mxu0 0.0
        %644 = vmatprep.subr.mxu0 0.0
        %645 = vmatpush1.xpose.msra.mxu0 0.0
        %646 = vmatprep.subr.mxu0 0.0
        %647 = vmatpush1.xpose.msra.mxu0 0.0
        %648 = vmatprep.subr.mxu0 0.0
        %649 = vmatpush1.xpose.msra.mxu0 0.0
        %650 = vmatprep.subr.mxu0 0.0
        %v651 = vand.u32 %v280, 4294901760
        %v652 = vsub.f32 %v280, %v651
        %v653 = vand.u32 %v652, 4294901760
        %654 = vmatpush1.xpose.msra.mxu0 %v653
        %655 = vmatprep.subr.mxu0 0.0
        %v656 = vand.u32 %v277, 4294901760
        %v657 = vsub.f32 %v277, %v656
        %v658 = vand.u32 %v657, 4294901760
        %659 = vmatpush1.xpose.msra.mxu0 %v658
        %660 = vmatprep.subr.mxu0 0.0
        %661 = vmatpush2.xpose.msra.mxu0 0.0
        %662 = vmatprep.subr.mxu0 0.0
        %663 = vmatpush2.xpose.msra.mxu0 0.0
        %664 = vmatprep.subr.mxu0 0.0
        %665 = vmatpush2.xpose.msra.mxu0 0.0
        %666 = vmatprep.subr.mxu0 0.0
        %667 = vmatpush2.xpose.msra.mxu0 0.0
        %668 = vmatprep.subr.mxu0 0.0
        %669 = vmatpush2.xpose.msra.mxu0 0.0
        %670 = vmatprep.subr.mxu0 0.0
        %671 = vmatpush2.xpose.msra.mxu0 0.0
        %672 = vmatprep.subr.mxu0 0.0
        %673 = vmatpush2.xpose.msra.mxu0 0.0
        %674 = vmatprep.subr.mxu0 0.0
        %675 = vmatpush2.xpose.msra.mxu0 0.0
        %676 = vmatprep.subr.mxu0 0.0
        %677 = vmatpush2.xpose.msra.mxu0 0.0
        %678 = vmatprep.subr.mxu0 0.0
        %679 = vmatpush2.xpose.msra.mxu0 0.0
        %680 = vmatprep.subr.mxu0 0.0
        %681 = vmatpush2.xpose.msra.mxu0 0.0
        %682 = vmatprep.subr.mxu0 0.0
        %683 = vmatpush2.xpose.msra.mxu0 0.0
        %684 = vmatprep.subr.mxu0 0.0
        %685 = vmatpush2.xpose.msra.mxu0 0.0
        %686 = vmatprep.subr.mxu0 0.0
        %687 = vmatpush2.xpose.msra.mxu0 0.0
        %688 = vmatprep.subr.mxu0 0.0
        %689 = vmatpush2.xpose.msra.mxu0 0.0
        %690 = vmatprep.subr.mxu0 0.0
        %691 = vmatpush2.xpose.msra.mxu0 0.0
        %692 = vmatprep.mubr.f32.mxu0 0.0
        %v693 = vand.u32 %v271, 4294901760
        %694 = vmatmul.mubr.f32.gmra.mxu0 %v693
        %v695 = vpop.f32.mrf.mxu0
        %v696 = vadd.f32 %v611, %v695
        %v697 = vpop.f32.mrf.mxu0
        %698 = vmatprep.mubr.f32.mxu0 0.0
        %v699 = vand.u32 %v274, 4294901760
        %700 = vmatmul.mubr.f32.gmra.mxu0 %v699
        %v701 = vpop.f32.mrf.mxu0
        %v702 = vadd.f32 %v619, %v701
        %v703 = vpop.f32.mrf.mxu0
        %704 = vdwg.mxu0
        %705 = vmatprep.subr.mxu0 0.0
        %706 = vmatpush1.xpose.msra.mxu0 0.0
        %707 = vmatprep.subr.mxu0 0.0
        %708 = vmatpush1.xpose.msra.mxu0 0.0
        %709 = vmatprep.subr.mxu0 0.0
        %710 = vmatpush1.xpose.msra.mxu0 0.0
        %711 = vmatprep.subr.mxu0 0.0
        %712 = vmatpush1.xpose.msra.mxu0 0.0
        %713 = vmatprep.subr.mxu0 0.0
        %714 = vmatpush1.xpose.msra.mxu0 0.0
        %715 = vmatprep.subr.mxu0 0.0
        %716 = vmatpush1.xpose.msra.mxu0 0.0
        %717 = vmatprep.subr.mxu0 0.0
        %718 = vmatpush1.xpose.msra.mxu0 0.0
        %719 = vmatprep.subr.mxu0 0.0
        %720 = vmatpush1.xpose.msra.mxu0 0.0
        %721 = vmatprep.subr.mxu0 0.0
        %722 = vmatpush1.xpose.msra.mxu0 0.0
        %723 = vmatprep.subr.mxu0 0.0
        %724 = vmatpush1.xpose.msra.mxu0 0.0
        %725 = vmatprep.subr.mxu0 0.0
        %726 = vmatpush1.xpose.msra.mxu0 0.0
        %727 = vmatprep.subr.mxu0 0.0
        %728 = vmatpush1.xpose.msra.mxu0 0.0
        %729 = vmatprep.subr.mxu0 0.0
        %730 = vmatpush1.xpose.msra.mxu0 0.0
        %731 = vmatprep.subr.mxu0 0.0
        %732 = vmatpush1.xpose.msra.mxu0 0.0
        %733 = vmatprep.subr.mxu0 0.0
        %v734 = vand.u32 %v280, 4294901760
        %735 = vmatpush1.xpose.msra.mxu0 %v734
        %736 = vmatprep.subr.mxu0 0.0
        %v737 = vand.u32 %v277, 4294901760
        %738 = vmatpush1.xpose.msra.mxu0 %v737
        %739 = vmatprep.subr.mxu0 0.0
        %740 = vmatpush2.xpose.msra.mxu0 0.0
        %741 = vmatprep.subr.mxu0 0.0
        %742 = vmatpush2.xpose.msra.mxu0 0.0
        %743 = vmatprep.subr.mxu0 0.0
        %744 = vmatpush2.xpose.msra.mxu0 0.0
        %745 = vmatprep.subr.mxu0 0.0
        %746 = vmatpush2.xpose.msra.mxu0 0.0
        %747 = vmatprep.subr.mxu0 0.0
        %748 = vmatpush2.xpose.msra.mxu0 0.0
        %749 = vmatprep.subr.mxu0 0.0
        %750 = vmatpush2.xpose.msra.mxu0 0.0
        %751 = vmatprep.subr.mxu0 0.0
        %752 = vmatpush2.xpose.msra.mxu0 0.0
        %753 = vmatprep.subr.mxu0 0.0
        %754 = vmatpush2.xpose.msra.mxu0 0.0
        %755 = vmatprep.subr.mxu0 0.0
        %756 = vmatpush2.xpose.msra.mxu0 0.0
        %757 = vmatprep.subr.mxu0 0.0
        %758 = vmatpush2.xpose.msra.mxu0 0.0
        %759 = vmatprep.subr.mxu0 0.0
        %760 = vmatpush2.xpose.msra.mxu0 0.0
        %761 = vmatprep.subr.mxu0 0.0
        %762 = vmatpush2.xpose.msra.mxu0 0.0
        %763 = vmatprep.subr.mxu0 0.0
        %764 = vmatpush2.xpose.msra.mxu0 0.0
        %765 = vmatprep.subr.mxu0 0.0
        %766 = vmatpush2.xpose.msra.mxu0 0.0
        %767 = vmatprep.subr.mxu0 0.0
        %768 = vmatpush2.xpose.msra.mxu0 0.0
        %769 = vmatprep.subr.mxu0 0.0
        %770 = vmatpush2.xpose.msra.mxu0 0.0
        %771 = vmatprep.mubr.f32.mxu0 0.0
        %v772 = vand.u32 %v271, 4294901760
        %773 = vmatmul.mubr.f32.gmra.mxu0 %v772
        %v774 = vpop.f32.mrf.mxu0
        %v775 = vadd.f32 %v696, %v774
        %v776 = vpop.f32.mrf.mxu0
        %777 = vmatprep.mubr.f32.mxu0 0.0
        %v778 = vand.u32 %v274, 4294901760
        %779 = vmatmul.mubr.f32.gmra.mxu0 %v778
        %v780 = vpop.f32.mrf.mxu0
        %v781 = vadd.f32 %v702, %v780
        %v782 = vpop.f32.mrf.mxu0
        %783 = vdwg.mxu0
        %v784 = vld [vmem:[%s3] sm:$0xf]
        %v785 = vld [vmem:[%s3 + $0x4] sm:$0xf]
        %v786 = vld [vmem:[%s3 + $0x8] sm:$0xf]
        %v787 = vld [vmem:[%s3 + $0xc] sm:$0xf]
        %v792 = vunpack.c.l.b16 %v784
        %v793 = vunpack.c.l.b16 %v785
        %v794 = vunpack.c.l.b16 %v786
        %v795 = vunpack.c.l.b16 %v787
        %v796 = vpack.c.b16 %v793, %v792
        %v797 = vpack.c.b16 %v795, %v794
        %v801 = vsel %vm256, %v253, 0
        %803 = vmatprep.subr.bf16.mxu0 0
        %804 = vmatpush1.bf16.msra.mxu0 0
        %805 = vmatprep.subr.bf16.mxu0 0
        %806 = vmatpush1.bf16.msra.mxu0 0
        %807 = vmatprep.subr.bf16.mxu0 0
        %808 = vmatpush1.bf16.msra.mxu0 0
        %809 = vmatprep.subr.bf16.mxu0 0
        %810 = vmatpush1.bf16.msra.mxu0 0
        %811 = vmatprep.subr.bf16.mxu0 0
        %812 = vmatpush1.bf16.msra.mxu0 0
        %813 = vmatprep.subr.bf16.mxu0 0
        %814 = vmatpush1.bf16.msra.mxu0 0
        %815 = vmatprep.subr.bf16.mxu0 0
        %816 = vmatpush1.bf16.msra.mxu0 %v797
        %817 = vmatprep.subr.bf16.mxu0 0
        %818 = vmatpush1.bf16.msra.mxu0 %v796
        %819 = vmatprep.subr.bf16.mxu0 0
        %820 = vmatpush2.bf16.msra.mxu0 0
        %821 = vmatprep.subr.bf16.mxu0 0
        %822 = vmatpush2.bf16.msra.mxu0 0
        %823 = vmatprep.subr.bf16.mxu0 0
        %824 = vmatpush2.bf16.msra.mxu0 0
        %825 = vmatprep.subr.bf16.mxu0 0
        %826 = vmatpush2.bf16.msra.mxu0 0
        %827 = vmatprep.subr.bf16.mxu0 0
        %828 = vmatpush2.bf16.msra.mxu0 0
        %829 = vmatprep.subr.bf16.mxu0 0
        %830 = vmatpush2.bf16.msra.mxu0 0
        %831 = vmatprep.subr.bf16.mxu0 0
        %832 = vmatpush2.bf16.msra.mxu0 0
        %833 = vmatprep.subr.bf16.mxu0 0
        %834 = vmatpush2.bf16.msra.mxu0 0
        %835 = vmatprep.mubr.bf16.mxu0 0
        %836 = vmatmul.mubr.bf16.gmra.mxu0 %v801
        %v837 = vpop.f32.mrf.mxu0
        %v838 = vadd.f32 0.0, %v837
        %v839 = vpop.f32.mrf.mxu0
        %v840 = vpop.f32.mrf.mxu0
        %v841 = vadd.f32 0.0, %v840
        %v842 = vpop.f32.mrf.mxu0
        %843 = vdwg.mxu0
        %v844 = vld [vmem:[%s4] sm:$0xf]
        %v845 = vld [vmem:[%s4 + $0x4] sm:$0xf]
        %v846 = vld [vmem:[%s4 + $0x8] sm:$0xf]
        %v847 = vld [vmem:[%s4 + $0xc] sm:$0xf]
        %v848 = vld [vmem:[%s5] sm:$0x1]
        %v850 = vlaneseq
        %v851 = vshrl.u32 %v850, 7
        %v852 = vsub.s32 0, %v851
        %v853 = vrot.slane %v848, %v852
        %v859 = vunpack.c.l.b16 %v844
        %v860 = vunpack.c.l.b16 %v845
        %v861 = vunpack.c.l.b16 %v846
        %v862 = vunpack.c.l.b16 %v847
        %v863 = vpack.c.b16 %v860, %v859
        %v864 = vpack.c.b16 %v862, %v861
        %867 = vmatprep.subr.bf16.mxu0 0
        %868 = vmatpush1.bf16.msra.mxu0 0
        %869 = vmatprep.subr.bf16.mxu0 0
        %870 = vmatpush1.bf16.msra.mxu0 0
        %871 = vmatprep.subr.bf16.mxu0 0
        %872 = vmatpush1.bf16.msra.mxu0 0
        %873 = vmatprep.subr.bf16.mxu0 0
        %874 = vmatpush1.bf16.msra.mxu0 0
        %875 = vmatprep.subr.bf16.mxu0 0
        %876 = vmatpush1.bf16.msra.mxu0 0
        %877 = vmatprep.subr.bf16.mxu0 0
        %878 = vmatpush1.bf16.msra.mxu0 0
        %879 = vmatprep.subr.bf16.mxu0 0
        %880 = vmatpush1.bf16.msra.mxu0 %v864
        %881 = vmatprep.subr.bf16.mxu0 0
        %882 = vmatpush1.bf16.msra.mxu0 %v863
        %883 = vmatprep.subr.bf16.mxu0 0
        %884 = vmatpush2.bf16.msra.mxu0 0
        %885 = vmatprep.subr.bf16.mxu0 0
        %886 = vmatpush2.bf16.msra.mxu0 0
        %887 = vmatprep.subr.bf16.mxu0 0
        %888 = vmatpush2.bf16.msra.mxu0 0
        %889 = vmatprep.subr.bf16.mxu0 0
        %890 = vmatpush2.bf16.msra.mxu0 0
        %891 = vmatprep.subr.bf16.mxu0 0
        %892 = vmatpush2.bf16.msra.mxu0 0
        %893 = vmatprep.subr.bf16.mxu0 0
        %894 = vmatpush2.bf16.msra.mxu0 0
        %895 = vmatprep.subr.bf16.mxu0 0
        %896 = vmatpush2.bf16.msra.mxu0 0
        %897 = vmatprep.subr.bf16.mxu0 0
        %898 = vmatpush2.bf16.msra.mxu0 0
        %899 = vmatprep.mubr.bf16.mxu0 0
        %900 = vmatmul.mubr.bf16.gmra.mxu0 %v801
        %v901 = vpop.f32.mrf.mxu0
        %v902 = vadd.f32 %v853, %v901
        %v903 = vpop.f32.mrf.mxu0
        %v904 = vpop.f32.mrf.mxu0
        %v905 = vadd.f32 %v853, %v904
        %v906 = vpop.f32.mrf.mxu0
        %907 = vdwg.mxu0
        %v908 = vlaneseq
        %v909 = vand.u32 %v908, 127
        %v910 = vcvt.s32.f32 %v909
        %vm911 = vcmask 130048
        %v912 = vsel %vm911, %v775, inf
        %913 = vmin.xlane.f32.xlu0 %v912
        %v914 = vpop.xlane.xlu0 %913
        %v915 = vsel %vm911, %v781, inf
        %916 = vmin.xlane.f32.xlu0 %v915
        %v917 = vpop.xlane.xlu0 %916
        %vm918 = vcmp.le.f32.partialorder %v775, %v914
        %vm919 = vcmp.le.f32.partialorder %v781, %v917
        %v920 = vsel %vm918, %v910, 16.0
        %v921 = vsel %vm919, %v910, 16.0
        %v922 = vsel %vm911, %v920, inf
        %923 = vmin.xlane.f32.xlu0 %v922
        %v924 = vpop.xlane.xlu0 %923
        %v925 = vsel %vm911, %v921, inf
        %926 = vmin.xlane.f32.xlu0 %v925
        %v927 = vpop.xlane.xlu0 %926
        %vm928 = vcmp.eq.f32.partialorder %v910, %v924
        %vm929 = vcmp.eq.f32.partialorder %v910, %v927
        %v930 = vsel %vm928, 1, 0
        %v931 = vsel %vm929, 1, 0
        %v932 = vcvt.s32.f32 %v930
        %v933 = vcvt.s32.f32 %v931
        %vm934 = vcmp.gt.f32.partialorder %v932, 0.0
        %vm935 = vcmp.gt.f32.partialorder %v933, 0.0
        %v936 = vsel %vm934, inf, %v775
        %v937 = vsel %vm935, inf, %v781
        %v938 = vsel %vm911, %v936, inf
        %939 = vmin.xlane.f32.xlu0 %v938
        %v940 = vpop.xlane.xlu0 %939
        %v941 = vsel %vm911, %v937, inf
        %942 = vmin.xlane.f32.xlu0 %v941
        %v943 = vpop.xlane.xlu0 %942
        %vm944 = vcmp.le.f32.partialorder %v936, %v940
        %vm945 = vcmp.le.f32.partialorder %v937, %v943
        %v946 = vsel %vm944, %v910, 16.0
        %v947 = vsel %vm945, %v910, 16.0
        %v948 = vsel %vm911, %v946, inf
        %949 = vmin.xlane.f32.xlu0 %v948
        %v950 = vpop.xlane.xlu0 %949
        %v951 = vsel %vm911, %v947, inf
        %952 = vmin.xlane.f32.xlu0 %v951
        %v953 = vpop.xlane.xlu0 %952
        %vm954 = vcmp.eq.f32.partialorder %v910, %v950
        %vm955 = vcmp.eq.f32.partialorder %v910, %v953
        %v956 = vsel %vm954, 1, 0
        %v957 = vsel %vm955, 1, 0
        %v958 = vcvt.s32.f32 %v956
        %v959 = vcvt.s32.f32 %v957
        %vm960 = vcmp.gt.f32.partialorder %v958, 0.0
        %vm961 = vcmp.gt.f32.partialorder %v959, 0.0
        %v962 = vsel %vm960, inf, %v936
        %v963 = vsel %vm961, inf, %v937
        %v964 = vsel %vm911, %v962, inf
        %965 = vmin.xlane.f32.xlu0 %v964
        %v966 = vpop.xlane.xlu0 %965
        %v967 = vsel %vm911, %v963, inf
        %968 = vmin.xlane.f32.xlu0 %v967
        %v969 = vpop.xlane.xlu0 %968
        %vm970 = vcmp.le.f32.partialorder %v962, %v966
        %vm971 = vcmp.le.f32.partialorder %v963, %v969
        %v972 = vsel %vm970, %v910, 16.0
        %v973 = vsel %vm971, %v910, 16.0
        %v974 = vsel %vm911, %v972, inf
        %975 = vmin.xlane.f32.xlu0 %v974
        %v976 = vpop.xlane.xlu0 %975
        %v977 = vsel %vm911, %v973, inf
        %978 = vmin.xlane.f32.xlu0 %v977
        %v979 = vpop.xlane.xlu0 %978
        %vm980 = vcmp.eq.f32.partialorder %v910, %v976
        %vm981 = vcmp.eq.f32.partialorder %v910, %v979
        %v982 = vsel %vm980, 1, 0
        %v983 = vsel %vm981, 1, 0
        %v984 = vcvt.s32.f32 %v982
        %v985 = vcvt.s32.f32 %v983
        %vm986 = vcmp.gt.f32.partialorder %v984, 0.0
        %vm987 = vcmp.gt.f32.partialorder %v985, 0.0
        %v988 = vsel %vm986, inf, %v962
        %v989 = vsel %vm987, inf, %v963
        %v990 = vsel %vm911, %v988, inf
        %991 = vmin.xlane.f32.xlu0 %v990
        %v992 = vpop.xlane.xlu0 %991
        %v993 = vsel %vm911, %v989, inf
        %994 = vmin.xlane.f32.xlu0 %v993
        %v995 = vpop.xlane.xlu0 %994
        %vm996 = vcmp.le.f32.partialorder %v988, %v992
        %vm997 = vcmp.le.f32.partialorder %v989, %v995
        %v998 = vsel %vm996, %v910, 16.0
        %v999 = vsel %vm997, %v910, 16.0
        %v1000 = vsel %vm911, %v998, inf
        %1001 = vmin.xlane.f32.xlu0 %v1000
        %v1002 = vpop.xlane.xlu0 %1001
        %v1003 = vsel %vm911, %v999, inf
        %1004 = vmin.xlane.f32.xlu0 %v1003
        %v1005 = vpop.xlane.xlu0 %1004
        %vm1006 = vcmp.eq.f32.partialorder %v910, %v1002
        %vm1007 = vcmp.eq.f32.partialorder %v910, %v1005
        %v1008 = vsel %vm1006, 1, 0
        %v1009 = vsel %vm1007, 1, 0
        %v1010 = vcvt.s32.f32 %v1008
        %v1011 = vcvt.s32.f32 %v1009
        %vm1012 = vcmp.gt.f32.partialorder %v1010, 0.0
        %vm1013 = vcmp.gt.f32.partialorder %v1011, 0.0
        %v1014 = vsel %vm1012, inf, %v988
        %v1015 = vsel %vm1013, inf, %v989
        %v1016 = vsel %vm911, %v1014, inf
        %1017 = vmin.xlane.f32.xlu0 %v1016
        %v1018 = vpop.xlane.xlu0 %1017
        %v1019 = vsel %vm911, %v1015, inf
        %1020 = vmin.xlane.f32.xlu0 %v1019
        %v1021 = vpop.xlane.xlu0 %1020
        %vm1022 = vcmp.le.f32.partialorder %v1014, %v1018
        %vm1023 = vcmp.le.f32.partialorder %v1015, %v1021
        %v1024 = vsel %vm1022, %v910, 16.0
        %v1025 = vsel %vm1023, %v910, 16.0
        %v1026 = vsel %vm911, %v1024, inf
        %1027 = vmin.xlane.f32.xlu0 %v1026
        %v1028 = vpop.xlane.xlu0 %1027
        %v1029 = vsel %vm911, %v1025, inf
        %1030 = vmin.xlane.f32.xlu0 %v1029
        %v1031 = vpop.xlane.xlu0 %1030
        %vm1032 = vcmp.eq.f32.partialorder %v910, %v1028
        %vm1033 = vcmp.eq.f32.partialorder %v910, %v1031
        %v1034 = vsel %vm1032, 1, 0
        %v1035 = vsel %vm1033, 1, 0
        %v1036 = vcvt.s32.f32 %v1034
        %v1037 = vcvt.s32.f32 %v1035
        %v1039 = vsel %vm911, %v932, 0
        %v1042 = vsel %vm911, %v933, 0
        %v1045 = vsel %vm911, %v958, 0
        %v1048 = vsel %vm911, %v959, 0
        %v1051 = vsel %vm911, %v984, 0
        %v1054 = vsel %vm911, %v985, 0
        %v1057 = vsel %vm911, %v1010, 0
        %v1060 = vsel %vm911, %v1011, 0
        %v1063 = vsel %vm911, %v1036, 0
        %v1066 = vsel %vm911, %v1037, 0
        %1068 = vmatprep.subr.mxu0 0.0
        %1069 = vmatpush1.msra.mxu0 0.0
        %1070 = vmatprep.subr.mxu0 0.0
        %1071 = vmatpush1.msra.mxu0 0.0
        %1072 = vmatprep.subr.mxu0 0.0
        %1073 = vmatpush1.msra.mxu0 0.0
        %1074 = vmatprep.subr.mxu0 0.0
        %1075 = vmatpush1.msra.mxu0 0.0
        %1076 = vmatprep.subr.mxu0 0.0
        %1077 = vmatpush1.msra.mxu0 0.0
        %1078 = vmatprep.subr.mxu0 0.0
        %1079 = vmatpush1.msra.mxu0 0.0
        %1080 = vmatprep.subr.mxu0 0.0
        %1081 = vmatpush1.msra.mxu0 0.0
        %1082 = vmatprep.subr.mxu0 0.0
        %1083 = vmatpush1.msra.mxu0 0.0
        %1084 = vmatprep.subr.mxu0 0.0
        %1085 = vmatpush1.msra.mxu0 0.0
        %1086 = vmatprep.subr.mxu0 0.0
        %1087 = vmatpush1.msra.mxu0 0.0
        %1088 = vmatprep.subr.mxu0 0.0
        %1089 = vmatpush1.msra.mxu0 0.0
        %1090 = vmatprep.subr.mxu0 0.0
        %1091 = vmatpush1.msra.mxu0 0.0
        %1092 = vmatprep.subr.mxu0 0.0
        %1093 = vmatpush1.msra.mxu0 0.0
        %1094 = vmatprep.subr.mxu0 0.0
        %1095 = vmatpush1.msra.mxu0 0.0
        %1096 = vmatprep.subr.mxu0 0.0
        %1097 = vmatpush1.msra.mxu0 %v841
        %1098 = vmatprep.subr.mxu0 0.0
        %1099 = vmatpush1.msra.mxu0 %v838
        %1100 = vmatprep.subr.mxu0 0.0
        %1101 = vmatpush2.msra.mxu0 0.0
        %1102 = vmatprep.subr.mxu0 0.0
        %1103 = vmatpush2.msra.mxu0 0.0
        %1104 = vmatprep.subr.mxu0 0.0
        %1105 = vmatpush2.msra.mxu0 0.0
        %1106 = vmatprep.subr.mxu0 0.0
        %1107 = vmatpush2.msra.mxu0 0.0
        %1108 = vmatprep.subr.mxu0 0.0
        %1109 = vmatpush2.msra.mxu0 0.0
        %1110 = vmatprep.subr.mxu0 0.0
        %1111 = vmatpush2.msra.mxu0 0.0
        %1112 = vmatprep.subr.mxu0 0.0
        %1113 = vmatpush2.msra.mxu0 0.0
        %1114 = vmatprep.subr.mxu0 0.0
        %1115 = vmatpush2.msra.mxu0 0.0
        %1116 = vmatprep.subr.mxu0 0.0
        %1117 = vmatpush2.msra.mxu0 0.0
        %1118 = vmatprep.subr.mxu0 0.0
        %1119 = vmatpush2.msra.mxu0 0.0
        %1120 = vmatprep.subr.mxu0 0.0
        %1121 = vmatpush2.msra.mxu0 0.0
        %1122 = vmatprep.subr.mxu0 0.0
        %1123 = vmatpush2.msra.mxu0 0.0
        %1124 = vmatprep.subr.mxu0 0.0
        %1125 = vmatpush2.msra.mxu0 0.0
        %1126 = vmatprep.subr.mxu0 0.0
        %1127 = vmatpush2.msra.mxu0 0.0
        %1128 = vmatprep.subr.mxu0 0.0
        %1129 = vmatpush2.msra.mxu0 0.0
        %1130 = vmatprep.subr.mxu0 0.0
        %1131 = vmatpush2.msra.mxu0 0.0
        %1132 = vmatprep.mubr.f32.mxu0 0.0
        %1133 = vmatmul.mubr.f32.gmra.mxu0 %v1039
        %v1134 = vpop.f32.mrf.mxu0
        %v1135 = vadd.f32 0.0, %v1134
        %v1136 = vpop.f32.mrf.mxu0
        %1137 = vmatprep.mubr.f32.mxu0 0.0
        %1138 = vmatmul.mubr.f32.gmra.mxu0 %v1042
        %v1139 = vpop.f32.mrf.mxu0
        %v1140 = vadd.f32 0.0, %v1139
        %v1141 = vpop.f32.mrf.mxu0
        %1142 = vmatprep.mubr.f32.mxu0 0.0
        %1143 = vmatmul.mubr.f32.gmra.mxu0 %v1045
        %v1144 = vpop.f32.mrf.mxu0
        %v1145 = vadd.f32 0.0, %v1144
        %v1146 = vpop.f32.mrf.mxu0
        %1147 = vmatprep.mubr.f32.mxu0 0.0
        %1148 = vmatmul.mubr.f32.gmra.mxu0 %v1048
        %v1149 = vpop.f32.mrf.mxu0
        %v1150 = vadd.f32 0.0, %v1149
        %v1151 = vpop.f32.mrf.mxu0
        %1152 = vmatprep.mubr.f32.mxu0 0.0
        %1153 = vmatmul.mubr.f32.gmra.mxu0 %v1051
        %v1154 = vpop.f32.mrf.mxu0
        %v1155 = vadd.f32 0.0, %v1154
        %v1156 = vpop.f32.mrf.mxu0
        %1157 = vmatprep.mubr.f32.mxu0 0.0
        %1158 = vmatmul.mubr.f32.gmra.mxu0 %v1054
        %v1159 = vpop.f32.mrf.mxu0
        %v1160 = vadd.f32 0.0, %v1159
        %v1161 = vpop.f32.mrf.mxu0
        %1162 = vmatprep.mubr.f32.mxu0 0.0
        %1163 = vmatmul.mubr.f32.gmra.mxu0 %v1057
        %v1164 = vpop.f32.mrf.mxu0
        %v1165 = vadd.f32 0.0, %v1164
        %v1166 = vpop.f32.mrf.mxu0
        %1167 = vmatprep.mubr.f32.mxu0 0.0
        %1168 = vmatmul.mubr.f32.gmra.mxu0 %v1060
        %v1169 = vpop.f32.mrf.mxu0
        %v1170 = vadd.f32 0.0, %v1169
        %v1171 = vpop.f32.mrf.mxu0
        %1172 = vmatprep.mubr.f32.mxu0 0.0
        %1173 = vmatmul.mubr.f32.gmra.mxu0 %v1063
        %v1174 = vpop.f32.mrf.mxu0
        %v1175 = vadd.f32 0.0, %v1174
        %v1176 = vpop.f32.mrf.mxu0
        %1177 = vmatprep.mubr.f32.mxu0 0.0
        %1178 = vmatmul.mubr.f32.gmra.mxu0 %v1066
        %v1179 = vpop.f32.mrf.mxu0
        %v1180 = vadd.f32 0.0, %v1179
        %v1181 = vpop.f32.mrf.mxu0
        %1182 = vdwg.mxu0
        %v1183 = vmax.f32 %v1135, %v1145
        %v1184 = vmax.f32 %v1140, %v1150
        %v1185 = vmax.f32 %v1183, %v1155
        %v1186 = vmax.f32 %v1184, %v1160
        %v1187 = vmax.f32 %v1185, %v1165
        %v1188 = vmax.f32 %v1186, %v1170
        %v1189 = vmax.f32 %v1187, %v1175
        %v1190 = vmax.f32 %v1188, %v1180
        %v1191 = vadd.f32 %v1189, %v902
        %v1192 = vadd.f32 %v1190, %v905
        %v1193 = vlaneseq
        %v1194 = vshrl.u32 %v1193, 7
        %v1195 = vadd.s32 %v1194, 8
        %vm1196 = vcmp.eq.s32.totalorder %v1194, 0
        %vm1197 = vcmp.eq.s32.totalorder %v1195, 0
        %vm1198 = vcmp.eq.s32.totalorder %v1194, 15
        %vm1199 = vcmp.eq.s32.totalorder %v1195, 15
        %v1200 = vrot.slane %v251, 7
        %v1201 = vrot.slane %v252, 7
        %vm1202 = vcmp.lt.s32.totalorder %v1194, 1
        %v1203 = vsel %vm1202, %v1200, %v1201
        %v1204 = vsel %vm1202, %v1201, %v1200
        %v1205 = vsel %vm1196, 0.0, %v1204
        %v1206 = vsel %vm1197, 0.0, %v1203
        %v1207 = vrot.slane %v251, 1
        %v1208 = vrot.slane %v252, 1
        %vm1209 = vcmp.lt.s32.totalorder %v1194, 7
        %v1210 = vsel %vm1209, %v1207, %v1208
        %v1211 = vsel %vm1209, %v1208, %v1207
        %v1212 = vsel %vm1198, 0.0, %v1210
        %v1213 = vsel %vm1199, 0.0, %v1211
        %1216 = vrot.lane.b32.xlu0 %v251, 32
        %v1217 = vpop.permute.xlu0 %1216
        %1218 = vrot.lane.b32.xlu0 %v252, 32
        %v1219 = vpop.permute.xlu0 %1218
        %1224 = vrot.lane.b32.xlu0 %v1212, 64
        %v1225 = vpop.permute.xlu0 %1224
        %1226 = vrot.lane.b32.xlu0 %v1213, 64
        %v1227 = vpop.permute.xlu0 %1226
        %v1230 = vsel %vm256, %v1205, %v1217
        %v1231 = vsel %vm256, %v1206, %v1219
        %vm1232 = vcmask 523264
        %v1233 = vsel %vm1232, %v1230, %v1225
        %v1234 = vsel %vm1232, %v1231, %v1227
        %v1235 = vpack.c.bf16 %v1234, %v1233
        %v1236 = vld [vmem:[%s1] sm:$0xf]
        %v1237 = vld [vmem:[%s1 + $0x4] sm:$0xf]
        %v1238 = vld [vmem:[%s1 + $0x8] sm:$0xf]
        %v1239 = vld [vmem:[%s1 + $0xc] sm:$0xf]
        %v1240 = vld [vmem:[%s1 + $0x10] sm:$0xf]
        %v1241 = vld [vmem:[%s1 + $0x14] sm:$0xf]
        %v1242 = vld [vmem:[%s1 + $0x18] sm:$0xf]
        %v1243 = vld [vmem:[%s1 + $0x1c] sm:$0xf]
        %v1244 = vld [vmem:[%s1 + $0x20] sm:$0xf]
        %v1245 = vld [vmem:[%s1 + $0x24] sm:$0xf]
        %v1246 = vld [vmem:[%s1 + $0x28] sm:$0xf]
        %v1247 = vld [vmem:[%s1 + $0x2c] sm:$0xf]
        %v1248 = vld [vmem:[%s2] sm:$0x1]
        %v1250 = vlaneseq
        %v1251 = vshrl.u32 %v1250, 7
        %v1252 = vsub.s32 0, %v1251
        %v1253 = vrot.slane %v1248, %v1252
        %v1267 = vunpack.c.l.b16 %v1236
        %v1268 = vunpack.c.l.b16 %v1237
        %v1269 = vunpack.c.l.b16 %v1238
        %v1270 = vunpack.c.l.b16 %v1239
        %v1271 = vunpack.c.l.b16 %v1240
        %v1272 = vunpack.c.l.b16 %v1241
        %v1273 = vunpack.c.l.b16 %v1242
        %v1274 = vunpack.c.l.b16 %v1243
        %v1275 = vunpack.c.l.b16 %v1244
        %v1276 = vunpack.c.l.b16 %v1245
        %v1277 = vunpack.c.l.b16 %v1246
        %v1278 = vunpack.c.l.b16 %v1247
        %v1279 = vpack.c.b16 %v1268, %v1267
        %v1280 = vpack.c.b16 %v1270, %v1269
        %v1281 = vpack.c.b16 %v1272, %v1271
        %v1282 = vpack.c.b16 %v1274, %v1273
        %v1283 = vpack.c.b16 %v1276, %v1275
        %v1284 = vpack.c.b16 %v1278, %v1277
        %vm1291 = vcmask 785408
        %v1293 = vsel %vm1291, %v1235, 0
        %1295 = vmatprep.subr.bf16.mxu0 0
        %1296 = vmatpush1.bf16.msra.mxu0 0
        %1297 = vmatprep.subr.bf16.mxu0 0
        %1298 = vmatpush1.bf16.msra.mxu0 0
        %1299 = vmatprep.subr.bf16.mxu0 0
        %1300 = vmatpush1.bf16.msra.mxu0 %v1284
        %1301 = vmatprep.subr.bf16.mxu0 0
        %1302 = vmatpush1.bf16.msra.mxu0 %v1283
        %1303 = vmatprep.subr.bf16.mxu0 0
        %1304 = vmatpush1.bf16.msra.mxu0 %v1282
        %1305 = vmatprep.subr.bf16.mxu0 0
        %1306 = vmatpush1.bf16.msra.mxu0 %v1281
        %1307 = vmatprep.subr.bf16.mxu0 0
        %1308 = vmatpush1.bf16.msra.mxu0 %v1280
        %1309 = vmatprep.subr.bf16.mxu0 0
        %1310 = vmatpush1.bf16.msra.mxu0 %v1279
        %1311 = vmatprep.subr.bf16.mxu0 0
        %1312 = vmatpush2.bf16.msra.mxu0 0
        %1313 = vmatprep.subr.bf16.mxu0 0
        %1314 = vmatpush2.bf16.msra.mxu0 0
        %1315 = vmatprep.subr.bf16.mxu0 0
        %1316 = vmatpush2.bf16.msra.mxu0 0
        %1317 = vmatprep.subr.bf16.mxu0 0
        %1318 = vmatpush2.bf16.msra.mxu0 0
        %1319 = vmatprep.subr.bf16.mxu0 0
        %1320 = vmatpush2.bf16.msra.mxu0 0
        %1321 = vmatprep.subr.bf16.mxu0 0
        %1322 = vmatpush2.bf16.msra.mxu0 0
        %1323 = vmatprep.subr.bf16.mxu0 0
        %1324 = vmatpush2.bf16.msra.mxu0 0
        %1325 = vmatprep.subr.bf16.mxu0 0
        %1326 = vmatpush2.bf16.msra.mxu0 0
        %1327 = vmatprep.mubr.bf16.mxu0 0
        %1328 = vmatmul.mubr.bf16.gmra.mxu0 %v1293
        %v1329 = vpop.f32.mrf.mxu0
        %v1330 = vadd.f32 %v1253, %v1329
        %v1331 = vpop.f32.mrf.mxu0
        %v1332 = vpop.f32.mrf.mxu0
        %v1333 = vadd.f32 %v1253, %v1332
        %v1334 = vpop.f32.mrf.mxu0
        %1335 = vdwg.mxu0
        %v1336 = vadd.f32 %v1330, %v1191
        %v1337 = vadd.f32 %v1333, %v1192
        %v1338 = vmax.f32 %v1336, 0.0
        %v1339 = vmax.f32 %v1337, 0.0
        %v1340 = vrot.slane %v1338, 7
        %v1341 = vrot.slane %v1339, 7
        %v1342 = vsel %vm1202, %v1340, %v1341
        %v1343 = vsel %vm1202, %v1341, %v1340
        %v1344 = vsel %vm1196, 0.0, %v1343
        %v1345 = vsel %vm1197, 0.0, %v1342
        %v1346 = vrot.slane %v1338, 1
        %v1347 = vrot.slane %v1339, 1
        %v1348 = vsel %vm1209, %v1346, %v1347
        %v1349 = vsel %vm1209, %v1347, %v1346
        %v1350 = vsel %vm1198, 0.0, %v1348
        %v1351 = vsel %vm1199, 0.0, %v1349
        %v1352 = vmax.f32 %v1344, %v1338
        %v1353 = vmax.f32 %v1345, %v1339
        %v1354 = vmax.f32 %v1352, %v1350
        %v1355 = vmax.f32 %v1353, %v1351
        %1356 = vst.msk [vmem:[#allocation2] sm:$0xff] %vm256, %v1354
        %1357 = vst.msk [vmem:[#allocation2 + $0x8] sm:$0xff] %vm256, %v1355
        %v1358 = vld [vmem:[#allocation2] ss:$2 sm:$0xff]
        %1359 = vst.msk [vmem:[%s244] sm:$0xff] %vm256, %v1358
        %s1360 = sand.u32 %s159, 1
        %s1361 = scalar_lea.sflag [#allocation4], %s1360
        %s1362 = sand.u32 %s159, 1
        %s1363 = smul.addr %s1362, 8
        %s1364 = scalar_lea.vmem [#allocation3], %s1363
        // Predicated region
        $region45: #{tpu_custom_call.1} parent=43 // pred_check
          %p1365 = pneg %p169
        $region46: #{tpu_custom_call.1} parent=43 // pred_check_branch
          %1367 = sbr.rel (%p1365) target = $region48
        $region47: #{tpu_custom_call.1} parent=43 // pred_region
          %s1369 = ssub.s32 128, 128
          %1370 = vsyncadd %s1361, %s1369
          %s1371 = smul.addr %s20, 128
          %s1372 = scalar_lea.hbm %s6, %s1371
          %s1374 = sshll.u32 %s1364, 4
          %s1375 = int_to_ptr.vmem [resolvable:$true] %s1374
          %1377 = dma.vmem_to_hbm [thread:$0]  %s1375, 128, %s1372, %s1361
        $region48: #{tpu_custom_call.1} parent=43 // pred_fallthru
          _
      $region44: #{tpu_custom_call.1} parent=5 // pred_fallthru
        _
      %p1378 = scmp.le.s32.totalorder 2, %s15
      // Predicated region
      $region49: #{tpu_custom_call.1} parent=5 // pred_check
        %p1379 = pneg %p1378
      $region50: #{tpu_custom_call.1} parent=5 // pred_check_branch
        %1381 = sbr.rel (%p1379) target = $region52
      $region51: #{tpu_custom_call.1} parent=5 // pred_region
        %s1382 = ssub.s32 %s15, 2
        // Predicated region
        $region53: #{tpu_custom_call.1} parent=51 // pred_check
          %p1383 = pneg %p175
        $region54: #{tpu_custom_call.1} parent=51 // pred_check_branch
          %1385 = sbr.rel (%p1383) target = $region56
        $region55: #{tpu_custom_call.1} parent=51 // pred_region
          %s1386 = sand.u32 %s160, 1
          %s1387 = scalar_lea.sflag [#allocation4], %s1386
          %s1388 = sand.u32 %s160, 1
          %s1389 = smul.addr %s1388, 8
          %s1390 = scalar_lea.vmem [#allocation3], %s1389
          %1391 = dma.done %s1387, 128
        $region56: #{tpu_custom_call.1} parent=51 // pred_fallthru
          _
      $region52: #{tpu_custom_call.1} parent=5 // pred_fallthru
        _
    $region6: #{tpu_custom_call.1} parent=1 // loop_footer
      %s19 = sadd.s32 1, %s15
    $region7: #{tpu_custom_call.1} parent=1 // loop_footer_branch
      %14 = sbr.rel target = $region3
    $region8: #{tpu_custom_call.1} parent=1 // loop_exit
      _
    %1392 = vsyncpa [#allocation4], 1
    %s1393 = scalar_lea.sflag [#allocation4], 1
    %1394 = vsyncpa %s1393, 1

</llo_original>
